<compile_context>
chip_gen: v6e
topology: v6e:2x2x1
jax: 0.10.0
libtpu: 0.0.40
codegen_flags: <defaults>
</compile_context>

<pallas_src>
import math

import jax
import jax.numpy as jnp
from jax import lax
from jax.experimental import pallas as pl
from jax.experimental.pallas import tpu as pltpu


# ---------------- fused Pallas kernel ----------------

def _fused_kernel(x_ref, rc_ref, d_ref, p_ref,
                  m1u_ref, m1r_ref, b1r_ref, m2_ref, b2r_ref, o_ref):
    f32 = jnp.float32
    x = x_ref[0]      # (H, W*Cin)   row-flattened block input (pixel-major)
    rc = rc_ref[0]    # (2H, 2W*Cr)  row-flattened, center-cropped residual

    # --- ConvTranspose2d(k=2, s=2): block-diag matmuls + row-interleave (MXU) ---
    xd0 = jnp.dot(x, d_ref[0], preferred_element_type=f32)   # even output rows
    xd1 = jnp.dot(x, d_ref[1], preferred_element_type=f32)   # odd output rows
    up = (jnp.dot(p_ref[0], xd0, preferred_element_type=f32)
          + jnp.dot(p_ref[1], xd1, preferred_element_type=f32))  # (2H, 2W*F)
    # NOTE: ConvTranspose bias is folded into b1r_ref (conv1 effective bias).

    # --- conv1 (K split over [up | residual] channels) + ReLU: banded matmuls ---
    ho1 = up.shape[0] - 2
    acc1 = jnp.dot(up[0:ho1, :], m1u_ref[0], preferred_element_type=f32)
    acc1 = acc1 + jnp.dot(rc[0:ho1, :], m1r_ref[0], preferred_element_type=f32)
    for dy in (1, 2):
        acc1 = acc1 + jnp.dot(up[dy:dy + ho1, :], m1u_ref[dy], preferred_element_type=f32)
        acc1 = acc1 + jnp.dot(rc[dy:dy + ho1, :], m1r_ref[dy], preferred_element_type=f32)
    h1 = jnp.maximum(acc1 + b1r_ref[...], 0.0)                # (2H-2, (2W-2)*F)

    # --- conv2 + ReLU (output columns zero-padded to a 128-lane multiple) ---
    ho2 = ho1 - 2
    acc2 = jnp.dot(h1[0:ho2, :], m2_ref[0], preferred_element_type=f32)
    for dy in (1, 2):
        acc2 = acc2 + jnp.dot(h1[dy:dy + ho2, :], m2_ref[dy], preferred_element_type=f32)
    o_ref[0] = jnp.maximum(acc2 + b2r_ref[...], 0.0)          # (2H-4, Cpad)


# ---------------- BlockSpec helpers ----------------

def _batch_spec(shape):
    nd = len(shape)
    return pl.BlockSpec((1,) + tuple(shape[1:]),
                        lambda b, _nd=nd: (b,) + (0,) * (_nd - 1))


def _const_spec(shape):
    nd = len(shape)
    return pl.BlockSpec(tuple(shape), lambda b, _nd=nd: (0,) * _nd)


def _nbytes(a):
    return math.prod(a.shape) * a.dtype.itemsize


# ---------------- parameters ----------------

def init_params(key, number_of_input_channels, number_of_filters):
    """Deterministic parameter init with PyTorch weight shapes."""
    cin, f = number_of_input_channels, number_of_filters
    ks = jax.random.split(key, 6)

    def u(k, shape, fan_in):
        bound = 1.0 / (fan_in ** 0.5)
        return jax.random.uniform(k, shape, jnp.float32, -bound, bound)

    return dict(
        wt=u(ks[0], (cin, f, 2, 2), f * 4),     # ConvTranspose2d.weight (Cin, F, 2, 2)
        bt=u(ks[1], (f,), f * 4),               # ConvTranspose2d.bias
        w1=u(ks[2], (f, cin, 3, 3), cin * 9),   # Conv2d(Cin -> F).weight (OIHW)
        b1=u(ks[3], (f,), cin * 9),
        w2=u(ks[4], (f, f, 3, 3), f * 9),       # Conv2d(F -> F).weight (OIHW)
        b2=u(ks[5], (f,), f * 9),
    )


def prepare_kernel_consts(params, h, w):
    """Precompute (once) every constant matrix the fused kernel consumes."""
    wt, bt = params["wt"], params["bt"]          # (Cin, F, 2, 2), (F,)
    w1, b1 = params["w1"], params["b1"]          # (F, Cin, 3, 3), (F,)
    w2, b2 = params["w2"], params["b2"]          # (F, F, 3, 3),  (F,)
    cin, f = int(wt.shape[0]), int(wt.shape[1])
    cr = cin - f
    hi, wi = 2 * h, 2 * w
    wo1, wo2 = wi - 2, wi - 4
    f32 = jnp.float32

    # ConvTranspose2d(k=2,s=2) as block-diagonal matmuls, one per output-row parity p:
    #   up_flat[2i+p, (2j+q)*F + fo] = sum_c x_flat[i, j*Cin + c] * wt[c, fo, p, q] + bt[fo]
    eye_w = jnp.eye(w, dtype=f32)
    d_list = []
    for p in range(2):
        wt_p = jnp.transpose(wt[:, :, p, :], (0, 2, 1)).reshape(cin, 2 * f)  # [c, q*F+fo]
        d_list.append(jnp.einsum("jk,cd->jckd", eye_w, wt_p).reshape(w * cin, wi * f))
    d_mats = jnp.stack(d_list).astype(f32)                    # (2, W*Cin, 2W*F)

    # 0/1 row-interleave selection matrices: up_flat = P0 @ (x@D0) + P1 @ (x@D1)
    rows = jnp.arange(hi)[:, None]
    cols = 2 * jnp.arange(h)[None, :]
    pmats = jnp.stack([(rows == cols).astype(f32),
                       (rows == cols + 1).astype(f32)])       # (2, 2H, H)

    bt_row = jnp.tile(bt, wi)[None, :].astype(f32)            # (1, 2W*F)

    # 3x3 VALID conv as 3 banded matmuls (one per kernel row dy) on row-flat maps.
    def band(wo, win):
        return (jnp.arange(win)[None, None, :]
                == jnp.arange(wo)[None, :, None] + jnp.arange(3)[:, None, None]).astype(f32)

    w1t = jnp.transpose(w1, (2, 3, 1, 0))                     # (3, 3, Cin, F) = [dy,dx,ci,fo]
    w2t = jnp.transpose(w2, (2, 3, 1, 0))                     # (3, 3, F, F)
    band1 = band(wo1, wi)                                     # (3, Wo1, 2W)
    band2 = band(wo2, wo1)                                    # (3, Wo2, Wo1)

    m1u = jnp.stack([jnp.einsum("dox,dcf->xcof", band1, w1t[dy, :, :f, :]).reshape(wi * f, wo1 * f)
                     for dy in range(3)]).astype(f32)         # (3, 2W*F,  Wo1*F)  (up channels)
    m1r = jnp.stack([jnp.einsum("dox,dcf->xcof", band1, w1t[dy, :, f:, :]).reshape(wi * cr, wo1 * f)
                     for dy in range(3)]).astype(f32)         # (3, 2W*Cr, Wo1*F)  (residual channels)
    m2 = jnp.stack([jnp.einsum("dox,dcf->xcof", band2, w2t[dy]).reshape(wo1 * f, wo2 * f)
                    for dy in range(3)]).astype(f32)          # (3, Wo1*F, Wo2*F)

    # Fold the ConvTranspose bias into conv1's effective bias row:
    #   sum_dy bt_row @ M1u[dy]  ==  bt_row @ sum_dy M1u[dy]
    b1_row = jnp.tile(b1, wo1)[None, :].astype(f32)           # (1, Wo1*F)
    b1_row = b1_row + jnp.dot(bt_row, m1u.sum(axis=0),
                              precision=lax.Precision.HIGHEST)
    b2_row = jnp.tile(b2, wo2)[None, :].astype(f32)           # (1, Wo2*F)

    # Zero-pad conv2 output columns to a multiple of 128 so the final store is
    # lane-dense (unmasked vst); the wrapper slices the padding off.
    cols2 = wo2 * f
    cpad = ((cols2 + 127) // 128) * 128
    if cpad != cols2:
        m2 = jnp.pad(m2, ((0, 0), (0, 0), (0, cpad - cols2)))
        b2_row = jnp.pad(b2_row, ((0, 0), (0, cpad - cols2)))

    return dict(d=d_mats, p=pmats,
                m1u=m1u, m1r=m1r, b1_row=b1_row, m2=m2, b2_row=b2_row)


# ---------------- forward ----------------

def unet_upsampling_concat_block(block_input, residual_input, consts):
    """Forward pass; block_input/residual_input/output are NCHW (PyTorch convention)."""
    n, cin, h, w = block_input.shape
    cr = residual_input.shape[1]
    hi, wi = 2 * h, 2 * w
    f = consts["d"].shape[2] // wi
    ho1, wo1 = hi - 2, wi - 2
    ho2, wo2 = hi - 4, wi - 4
    cpad = consts["m2"].shape[2]                 # padded output column count

    # NCHW -> row-flattened slabs (rows = image rows, cols = x*C + c); thin XLA glue.
    x_flat = jnp.transpose(block_input, (0, 2, 3, 1)).reshape(n, h, w * cin)
    hr, wr = residual_input.shape[2], residual_input.shape[3]
    oy, ox = (hr - hi) // 2, (wr - wi) // 2
    rc = residual_input[:, :, oy:oy + hi, ox:ox + wi]          # static center crop
    rc_flat = jnp.transpose(rc, (0, 2, 3, 1)).reshape(n, hi, wi * cr)

    operands = (x_flat, rc_flat, consts["d"], consts["p"],
                consts["m1u"], consts["m1r"], consts["b1_row"],
                consts["m2"], consts["b2_row"])

    flops = 2 * n * (2 * h * (w * cin) * (wi * f)
                     + 2 * hi * h * (wi * f)
                     + 3 * ho1 * (wi * f) * (wo1 * f)
                     + 3 * ho1 * (wi * cr) * (wo1 * f)
                     + 3 * ho2 * (wo1 * f) * cpad)
    bytes_accessed = sum(_nbytes(a) for a in operands) + n * ho2 * cpad * 4

    out_flat = pl.pallas_call(
        _fused_kernel,
        grid=(n,),
        in_specs=[_batch_spec(x_flat.shape), _batch_spec(rc_flat.shape)]
                 + [_const_spec(a.shape) for a in operands[2:]],
        out_specs=_batch_spec((n, ho2, cpad)),
        out_shape=jax.ShapeDtypeStruct((n, ho2, cpad), jnp.float32),
        compiler_params=pltpu.CompilerParams(dimension_semantics=("parallel",)),
        cost_estimate=pl.CostEstimate(flops=flops, transcendentals=0,
                                      bytes_accessed=bytes_accessed),
    )(*operands)

    # (N, Ho2, Cpad) -> slice padding -> NCHW
    out_flat = out_flat[:, :, :wo2 * f]
    return jnp.transpose(out_flat.reshape(n, ho2, wo2, f), (0, 3, 1, 2))


# ---------------- pure-JAX reference (verification only) ----------------

def _reference_forward(block_input, residual_input, params):
    wt, bt = params["wt"], params["bt"]
    w1, b1 = params["w1"], params["b1"]
    w2, b2 = params["w2"], params["b2"]
    n, cin, h, w = block_input.shape
    f = wt.shape[1]
    up = jnp.einsum("ncij,cfpq->nfipjq", block_input, wt,
                    precision=lax.Precision.HIGHEST).reshape(n, f, 2 * h, 2 * w)
    up = up + bt[None, :, None, None]
    hr, wr = residual_input.shape[2], residual_input.shape[3]
    oy = (hr - 2 * h) // 2
    ox = (wr - 2 * w) // 2
    rc = residual_input[:, :, oy:oy + 2 * h, ox:ox + 2 * w]
    cat = jnp.concatenate([up, rc], axis=1)

    def conv(xx, wgt, b):
        y = lax.conv_general_dilated(
            xx, wgt, window_strides=(1, 1), padding="VALID",
            dimension_numbers=("NCHW", "OIHW", "NCHW"),
            precision=lax.Precision.HIGHEST)
        return jax.nn.relu(y + b[None, :, None, None])

    return conv(conv(cat, w1, b1), w2, b2)


if __name__ == "__main__":
    CIN, F = 8, 4   # number_of_input_channels=8, number_of_filters=4, padding=0
    key = jax.random.PRNGKey(0)
    kp, kx, kr = jax.random.split(key, 3)

    params = init_params(kp, CIN, F)
    block_input = jax.random.normal(kx, (2, CIN, 8, 8), jnp.float32)           # NCHW
    residual_input = jax.random.normal(kr, (2, CIN - F, 20, 20), jnp.float32)  # NCHW

    consts = prepare_kernel_consts(params, h=8, w=8)   # one-time weight transform
    fwd = jax.jit(unet_upsampling_concat_block)

    out = jax.block_until_ready(fwd(block_input, residual_input, consts))

    ref = _reference_forward(block_input, residual_input, params)
    assert out.shape == (2, F, 12, 12), out.shape
    max_err = float(jnp.max(jnp.abs(out - ref)))
    assert jnp.allclose(out, ref, rtol=1e-3, atol=1e-3), max_err
    print("KERNEL_OK")
</pallas_src>

<mosaic_0001>
module attributes {stable_mosaic.version = 11 : i64} {
  func.func @_fused_kernel(%arg0: i32, %arg1: memref<1x8x64xf32, #tpu.memory_space<vmem>>, %arg2: memref<1x16x64xf32, #tpu.memory_space<vmem>>, %arg3: memref<2x64x64xf32, #tpu.memory_space<vmem>>, %arg4: memref<2x16x8xf32, #tpu.memory_space<vmem>>, %arg5: memref<3x64x56xf32, #tpu.memory_space<vmem>>, %arg6: memref<3x64x56xf32, #tpu.memory_space<vmem>>, %arg7: memref<1x56xf32, #tpu.memory_space<vmem>>, %arg8: memref<3x56x128xf32, #tpu.memory_space<vmem>>, %arg9: memref<1x128xf32, #tpu.memory_space<vmem>>, %arg10: memref<1x12x128xf32, #tpu.memory_space<vmem>>) attributes {dimension_semantics = [#tpu.dimension_semantics<parallel>], iteration_bounds = array<i64: 2>, scalar_prefetch = 0 : i64, scratch_operands = 0 : i64, tpu.core_type = #tpu.core_type<tc>, window_params = [{transform_indices = @transform_0, window_bounds = array<i64: 1, 8, 64>}, {transform_indices = @transform_1, window_bounds = array<i64: 1, 16, 64>}, {pipeline_mode = #tpu.pipeline_mode<synchronous>, transform_indices = @transform_2, window_bounds = array<i64: 2, 64, 64>}, {pipeline_mode = #tpu.pipeline_mode<synchronous>, transform_indices = @transform_3, window_bounds = array<i64: 2, 16, 8>}, {pipeline_mode = #tpu.pipeline_mode<synchronous>, transform_indices = @transform_4, window_bounds = array<i64: 3, 64, 56>}, {pipeline_mode = #tpu.pipeline_mode<synchronous>, transform_indices = @transform_5, window_bounds = array<i64: 3, 64, 56>}, {pipeline_mode = #tpu.pipeline_mode<synchronous>, transform_indices = @transform_6, window_bounds = array<i64: 1, 56>}, {pipeline_mode = #tpu.pipeline_mode<synchronous>, transform_indices = @transform_7, window_bounds = array<i64: 3, 56, 128>}, {pipeline_mode = #tpu.pipeline_mode<synchronous>, transform_indices = @transform_8, window_bounds = array<i64: 1, 128>}, {transform_indices = @transform_9, window_bounds = array<i64: 1, 12, 128>}]} {
    %c0 = arith.constant 0 : index
    %c0_0 = arith.constant 0 : index
    %c0_1 = arith.constant 0 : index
    %0 = vector.load %arg1[%c0, %c0_0, %c0_1] : memref<1x8x64xf32, #tpu.memory_space<vmem>>, vector<1x8x64xf32>
    %1 = vector.shape_cast %0 : vector<1x8x64xf32> to vector<8x64xf32>
    %c0_2 = arith.constant 0 : index
    %c0_3 = arith.constant 0 : index
    %c0_4 = arith.constant 0 : index
    %2 = vector.load %arg2[%c0_2, %c0_3, %c0_4] : memref<1x16x64xf32, #tpu.memory_space<vmem>>, vector<1x16x64xf32>
    %3 = vector.shape_cast %2 : vector<1x16x64xf32> to vector<16x64xf32>
    %c0_5 = arith.constant 0 : index
    %c0_6 = arith.constant 0 : index
    %c0_7 = arith.constant 0 : index
    %4 = vector.load %arg3[%c0_5, %c0_6, %c0_7] : memref<2x64x64xf32, #tpu.memory_space<vmem>>, vector<1x64x64xf32>
    %5 = vector.shape_cast %4 : vector<1x64x64xf32> to vector<64x64xf32>
    %cst = arith.constant dense<0.000000e+00> : vector<8x64xf32>
    %6 = tpu.matmul %1, %5, %cst {dimension_numbers = #tpu.dot_dimension_numbers<[1], [0], [0], [1], [0, 0, 1, 1], [], []>} : vector<8x64xf32>, vector<64x64xf32>, vector<8x64xf32> -> vector<8x64xf32>
    %c1 = arith.constant 1 : index
    %c0_8 = arith.constant 0 : index
    %c0_9 = arith.constant 0 : index
    %7 = vector.load %arg3[%c1, %c0_8, %c0_9] : memref<2x64x64xf32, #tpu.memory_space<vmem>>, vector<1x64x64xf32>
    %8 = vector.shape_cast %7 : vector<1x64x64xf32> to vector<64x64xf32>
    %cst_10 = arith.constant dense<0.000000e+00> : vector<8x64xf32>
    %9 = tpu.matmul %1, %8, %cst_10 {dimension_numbers = #tpu.dot_dimension_numbers<[1], [0], [0], [1], [0, 0, 1, 1], [], []>} : vector<8x64xf32>, vector<64x64xf32>, vector<8x64xf32> -> vector<8x64xf32>
    %c0_11 = arith.constant 0 : index
    %c0_12 = arith.constant 0 : index
    %c0_13 = arith.constant 0 : index
    %10 = vector.load %arg4[%c0_11, %c0_12, %c0_13] : memref<2x16x8xf32, #tpu.memory_space<vmem>>, vector<1x16x8xf32>
    %11 = vector.shape_cast %10 : vector<1x16x8xf32> to vector<16x8xf32>
    %cst_14 = arith.constant dense<0.000000e+00> : vector<16x64xf32>
    %12 = tpu.matmul %11, %6, %cst_14 {dimension_numbers = #tpu.dot_dimension_numbers<[1], [0], [0], [1], [0, 0, 1, 1], [], []>} : vector<16x8xf32>, vector<8x64xf32>, vector<16x64xf32> -> vector<16x64xf32>
    %c1_15 = arith.constant 1 : index
    %c0_16 = arith.constant 0 : index
    %c0_17 = arith.constant 0 : index
    %13 = vector.load %arg4[%c1_15, %c0_16, %c0_17] : memref<2x16x8xf32, #tpu.memory_space<vmem>>, vector<1x16x8xf32>
    %14 = vector.shape_cast %13 : vector<1x16x8xf32> to vector<16x8xf32>
    %cst_18 = arith.constant dense<0.000000e+00> : vector<16x64xf32>
    %15 = tpu.matmul %14, %9, %cst_18 {dimension_numbers = #tpu.dot_dimension_numbers<[1], [0], [0], [1], [0, 0, 1, 1], [], []>} : vector<16x8xf32>, vector<8x64xf32>, vector<16x64xf32> -> vector<16x64xf32>
    %16 = arith.addf %12, %15 : vector<16x64xf32>
    %17 = vector.extract_strided_slice %16 {offsets = [0, 0], sizes = [14, 64], strides = [1, 1]} : vector<16x64xf32> to vector<14x64xf32>
    %c0_19 = arith.constant 0 : index
    %c0_20 = arith.constant 0 : index
    %c0_21 = arith.constant 0 : index
    %18 = vector.load %arg5[%c0_19, %c0_20, %c0_21] : memref<3x64x56xf32, #tpu.memory_space<vmem>>, vector<1x64x56xf32>
    %19 = vector.shape_cast %18 : vector<1x64x56xf32> to vector<64x56xf32>
    %cst_22 = arith.constant dense<0.000000e+00> : vector<14x56xf32>
    %20 = tpu.matmul %17, %19, %cst_22 {dimension_numbers = #tpu.dot_dimension_numbers<[1], [0], [0], [1], [0, 0, 1, 1], [], []>} : vector<14x64xf32>, vector<64x56xf32>, vector<14x56xf32> -> vector<14x56xf32>
    %21 = vector.extract_strided_slice %3 {offsets = [0, 0], sizes = [14, 64], strides = [1, 1]} : vector<16x64xf32> to vector<14x64xf32>
    %c0_23 = arith.constant 0 : index
    %c0_24 = arith.constant 0 : index
    %c0_25 = arith.constant 0 : index
    %22 = vector.load %arg6[%c0_23, %c0_24, %c0_25] : memref<3x64x56xf32, #tpu.memory_space<vmem>>, vector<1x64x56xf32>
    %23 = vector.shape_cast %22 : vector<1x64x56xf32> to vector<64x56xf32>
    %cst_26 = arith.constant dense<0.000000e+00> : vector<14x56xf32>
    %24 = tpu.matmul %21, %23, %cst_26 {dimension_numbers = #tpu.dot_dimension_numbers<[1], [0], [0], [1], [0, 0, 1, 1], [], []>} : vector<14x64xf32>, vector<64x56xf32>, vector<14x56xf32> -> vector<14x56xf32>
    %25 = arith.addf %20, %24 : vector<14x56xf32>
    %26 = vector.extract_strided_slice %16 {offsets = [1, 0], sizes = [14, 64], strides = [1, 1]} : vector<16x64xf32> to vector<14x64xf32>
    %c1_27 = arith.constant 1 : index
    %c0_28 = arith.constant 0 : index
    %c0_29 = arith.constant 0 : index
    %27 = vector.load %arg5[%c1_27, %c0_28, %c0_29] : memref<3x64x56xf32, #tpu.memory_space<vmem>>, vector<1x64x56xf32>
    %28 = vector.shape_cast %27 : vector<1x64x56xf32> to vector<64x56xf32>
    %cst_30 = arith.constant dense<0.000000e+00> : vector<14x56xf32>
    %29 = tpu.matmul %26, %28, %cst_30 {dimension_numbers = #tpu.dot_dimension_numbers<[1], [0], [0], [1], [0, 0, 1, 1], [], []>} : vector<14x64xf32>, vector<64x56xf32>, vector<14x56xf32> -> vector<14x56xf32>
    %30 = arith.addf %25, %29 : vector<14x56xf32>
    %31 = vector.extract_strided_slice %3 {offsets = [1, 0], sizes = [14, 64], strides = [1, 1]} : vector<16x64xf32> to vector<14x64xf32>
    %c1_31 = arith.constant 1 : index
    %c0_32 = arith.constant 0 : index
    %c0_33 = arith.constant 0 : index
    %32 = vector.load %arg6[%c1_31, %c0_32, %c0_33] : memref<3x64x56xf32, #tpu.memory_space<vmem>>, vector<1x64x56xf32>
    %33 = vector.shape_cast %32 : vector<1x64x56xf32> to vector<64x56xf32>
    %cst_34 = arith.constant dense<0.000000e+00> : vector<14x56xf32>
    %34 = tpu.matmul %31, %33, %cst_34 {dimension_numbers = #tpu.dot_dimension_numbers<[1], [0], [0], [1], [0, 0, 1, 1], [], []>} : vector<14x64xf32>, vector<64x56xf32>, vector<14x56xf32> -> vector<14x56xf32>
    %35 = arith.addf %30, %34 : vector<14x56xf32>
    %36 = vector.extract_strided_slice %16 {offsets = [2, 0], sizes = [14, 64], strides = [1, 1]} : vector<16x64xf32> to vector<14x64xf32>
    %c2 = arith.constant 2 : index
    %c0_35 = arith.constant 0 : index
    %c0_36 = arith.constant 0 : index
    %37 = vector.load %arg5[%c2, %c0_35, %c0_36] : memref<3x64x56xf32, #tpu.memory_space<vmem>>, vector<1x64x56xf32>
    %38 = vector.shape_cast %37 : vector<1x64x56xf32> to vector<64x56xf32>
    %cst_37 = arith.constant dense<0.000000e+00> : vector<14x56xf32>
    %39 = tpu.matmul %36, %38, %cst_37 {dimension_numbers = #tpu.dot_dimension_numbers<[1], [0], [0], [1], [0, 0, 1, 1], [], []>} : vector<14x64xf32>, vector<64x56xf32>, vector<14x56xf32> -> vector<14x56xf32>
    %40 = arith.addf %35, %39 : vector<14x56xf32>
    %41 = vector.extract_strided_slice %3 {offsets = [2, 0], sizes = [14, 64], strides = [1, 1]} : vector<16x64xf32> to vector<14x64xf32>
    %c2_38 = arith.constant 2 : index
    %c0_39 = arith.constant 0 : index
    %c0_40 = arith.constant 0 : index
    %42 = vector.load %arg6[%c2_38, %c0_39, %c0_40] : memref<3x64x56xf32, #tpu.memory_space<vmem>>, vector<1x64x56xf32>
    %43 = vector.shape_cast %42 : vector<1x64x56xf32> to vector<64x56xf32>
    %cst_41 = arith.constant dense<0.000000e+00> : vector<14x56xf32>
    %44 = tpu.matmul %41, %43, %cst_41 {dimension_numbers = #tpu.dot_dimension_numbers<[1], [0], [0], [1], [0, 0, 1, 1], [], []>} : vector<14x64xf32>, vector<64x56xf32>, vector<14x56xf32> -> vector<14x56xf32>
    %45 = arith.addf %40, %44 : vector<14x56xf32>
    %c0_42 = arith.constant 0 : index
    %c0_43 = arith.constant 0 : index
    %46 = vector.load %arg7[%c0_42, %c0_43] : memref<1x56xf32, #tpu.memory_space<vmem>>, vector<1x56xf32>
    %47 = vector.broadcast %46 : vector<1x56xf32> to vector<14x56xf32>
    %48 = arith.addf %45, %47 : vector<14x56xf32>
    %cst_44 = arith.constant 0.000000e+00 : f32
    %49 = vector.broadcast %cst_44 : f32 to vector<14x56xf32>
    %50 = arith.maximumf %48, %49 : vector<14x56xf32>
    %51 = vector.extract_strided_slice %50 {offsets = [0, 0], sizes = [12, 56], strides = [1, 1]} : vector<14x56xf32> to vector<12x56xf32>
    %c0_45 = arith.constant 0 : index
    %c0_46 = arith.constant 0 : index
    %c0_47 = arith.constant 0 : index
    %52 = vector.load %arg8[%c0_45, %c0_46, %c0_47] : memref<3x56x128xf32, #tpu.memory_space<vmem>>, vector<1x56x128xf32>
    %53 = vector.shape_cast %52 : vector<1x56x128xf32> to vector<56x128xf32>
    %cst_48 = arith.constant dense<0.000000e+00> : vector<12x128xf32>
    %54 = tpu.matmul %51, %53, %cst_48 {dimension_numbers = #tpu.dot_dimension_numbers<[1], [0], [0], [1], [0, 0, 1, 1], [], []>} : vector<12x56xf32>, vector<56x128xf32>, vector<12x128xf32> -> vector<12x128xf32>
    %55 = vector.extract_strided_slice %50 {offsets = [1, 0], sizes = [12, 56], strides = [1, 1]} : vector<14x56xf32> to vector<12x56xf32>
    %c1_49 = arith.constant 1 : index
    %c0_50 = arith.constant 0 : index
    %c0_51 = arith.constant 0 : index
    %56 = vector.load %arg8[%c1_49, %c0_50, %c0_51] : memref<3x56x128xf32, #tpu.memory_space<vmem>>, vector<1x56x128xf32>
    %57 = vector.shape_cast %56 : vector<1x56x128xf32> to vector<56x128xf32>
    %cst_52 = arith.constant dense<0.000000e+00> : vector<12x128xf32>
    %58 = tpu.matmul %55, %57, %cst_52 {dimension_numbers = #tpu.dot_dimension_numbers<[1], [0], [0], [1], [0, 0, 1, 1], [], []>} : vector<12x56xf32>, vector<56x128xf32>, vector<12x128xf32> -> vector<12x128xf32>
    %59 = arith.addf %54, %58 : vector<12x128xf32>
    %60 = vector.extract_strided_slice %50 {offsets = [2, 0], sizes = [12, 56], strides = [1, 1]} : vector<14x56xf32> to vector<12x56xf32>
    %c2_53 = arith.constant 2 : index
    %c0_54 = arith.constant 0 : index
    %c0_55 = arith.constant 0 : index
    %61 = vector.load %arg8[%c2_53, %c0_54, %c0_55] : memref<3x56x128xf32, #tpu.memory_space<vmem>>, vector<1x56x128xf32>
    %62 = vector.shape_cast %61 : vector<1x56x128xf32> to vector<56x128xf32>
    %cst_56 = arith.constant dense<0.000000e+00> : vector<12x128xf32>
    %63 = tpu.matmul %60, %62, %cst_56 {dimension_numbers = #tpu.dot_dimension_numbers<[1], [0], [0], [1], [0, 0, 1, 1], [], []>} : vector<12x56xf32>, vector<56x128xf32>, vector<12x128xf32> -> vector<12x128xf32>
    %64 = arith.addf %59, %63 : vector<12x128xf32>
    %c0_57 = arith.constant 0 : index
    %c0_58 = arith.constant 0 : index
    %65 = vector.load %arg9[%c0_57, %c0_58] : memref<1x128xf32, #tpu.memory_space<vmem>>, vector<1x128xf32>
    %66 = vector.broadcast %65 : vector<1x128xf32> to vector<12x128xf32>
    %67 = arith.addf %64, %66 : vector<12x128xf32>
    %cst_59 = arith.constant 0.000000e+00 : f32
    %68 = vector.broadcast %cst_59 : f32 to vector<12x128xf32>
    %69 = arith.maximumf %67, %68 : vector<12x128xf32>
    %c0_60 = arith.constant 0 : index
    %c0_61 = arith.constant 0 : index
    %c0_62 = arith.constant 0 : index
    %70 = vector.load %arg10[%c0_60, %c0_61, %c0_62] : memref<1x12x128xf32, #tpu.memory_space<vmem>>, vector<1x12x128xf32>
    %71 = vector.shape_cast %70 : vector<1x12x128xf32> to vector<12x128xf32>
    %72 = vector.shape_cast %69 : vector<12x128xf32> to vector<1x12x128xf32>
    tpu.vector_store %arg10[%c0_60, %c0_61, %c0_62], %72 {strides = array<i32>} : memref<1x12x128xf32, #tpu.memory_space<vmem>>, vector<1x12x128xf32>,
    return
  }
  func.func @transform_0(%arg0: i32) -> (i32, i32, i32) {
    %c0_i32 = arith.constant 0 : i32
    %c0_i32_0 = arith.constant 0 : i32
    %c0_i32_1 = arith.constant 0 : i32
    return %arg0, %c0_i32, %c0_i32_0 : i32, i32, i32
  }
  func.func @transform_1(%arg0: i32) -> (i32, i32, i32) {
    %c0_i32 = arith.constant 0 : i32
    %c0_i32_0 = arith.constant 0 : i32
    %c0_i32_1 = arith.constant 0 : i32
    return %arg0, %c0_i32, %c0_i32_0 : i32, i32, i32
  }
  func.func @transform_2(%arg0: i32) -> (i32, i32, i32) {
    %c0_i32 = arith.constant 0 : i32
    %c0_i32_0 = arith.constant 0 : i32
    %c0_i32_1 = arith.constant 0 : i32
    %c0_i32_2 = arith.constant 0 : i32
    return %c0_i32, %c0_i32_0, %c0_i32_1 : i32, i32, i32
  }
  func.func @transform_3(%arg0: i32) -> (i32, i32, i32) {
    %c0_i32 = arith.constant 0 : i32
    %c0_i32_0 = arith.constant 0 : i32
    %c0_i32_1 = arith.constant 0 : i32
    %c0_i32_2 = arith.constant 0 : i32
    return %c0_i32, %c0_i32_0, %c0_i32_1 : i32, i32, i32
  }
  func.func @transform_4(%arg0: i32) -> (i32, i32, i32) {
    %c0_i32 = arith.constant 0 : i32
    %c0_i32_0 = arith.constant 0 : i32
    %c0_i32_1 = arith.constant 0 : i32
    %c0_i32_2 = arith.constant 0 : i32
    return %c0_i32, %c0_i32_0, %c0_i32_1 : i32, i32, i32
  }
  func.func @transform_5(%arg0: i32) -> (i32, i32, i32) {
    %c0_i32 = arith.constant 0 : i32
    %c0_i32_0 = arith.constant 0 : i32
    %c0_i32_1 = arith.constant 0 : i32
    %c0_i32_2 = arith.constant 0 : i32
    return %c0_i32, %c0_i32_0, %c0_i32_1 : i32, i32, i32
  }
  func.func @transform_6(%arg0: i32) -> (i32, i32) {
    %c0_i32 = arith.constant 0 : i32
    %c0_i32_0 = arith.constant 0 : i32
    %c0_i32_1 = arith.constant 0 : i32
    return %c0_i32, %c0_i32_0 : i32, i32
  }
  func.func @transform_7(%arg0: i32) -> (i32, i32, i32) {
    %c0_i32 = arith.constant 0 : i32
    %c0_i32_0 = arith.constant 0 : i32
    %c0_i32_1 = arith.constant 0 : i32
    %c0_i32_2 = arith.constant 0 : i32
    return %c0_i32, %c0_i32_0, %c0_i32_1 : i32, i32, i32
  }
  func.func @transform_8(%arg0: i32) -> (i32, i32) {
    %c0_i32 = arith.constant 0 : i32
    %c0_i32_0 = arith.constant 0 : i32
    %c0_i32_1 = arith.constant 0 : i32
    return %c0_i32, %c0_i32_0 : i32, i32
  }
  func.func @transform_9(%arg0: i32) -> (i32, i32, i32) {
    %c0_i32 = arith.constant 0 : i32
    %c0_i32_0 = arith.constant 0 : i32
    %c0_i32_1 = arith.constant 0 : i32
    return %arg0, %c0_i32, %c0_i32_0 : i32, i32, i32
  }
}

</mosaic_0001>

<llo_original>
// kernel: unet_upsampling_concat_block.1
$region0: #{unet_upsampling_concat_block.1}
  #allocation0 [shape = 'u32[]', space=smem, size = 0x4, offset = 0x4, fixed_abs, tag = 'smem constant byte address 0x4 - core index']
  #allocation1 [shape = 'u32[144,128]{1,0:T(1,128)}', space=vmem, size = 0x12000, scoped, tag = 'internal scratch']
  %s0 = inlined_call_operand.vmem [shape: f32[2,8,64], index: 0, kind: input, shape index: {}]
  %s1 = inlined_call_operand.vmem [shape: f32[2,16,64], index: 1, kind: input, shape index: {}]
  %s2 = inlined_call_operand.vmem [shape: f32[2,64,64], index: 2, kind: input, shape index: {}]
  %s3 = inlined_call_operand.vmem [shape: f32[2,16,8], index: 3, kind: input, shape index: {}]
  %s4 = inlined_call_operand.vmem [shape: f32[3,64,56], index: 4, kind: input, shape index: {}]
  %s5 = inlined_call_operand.vmem [shape: f32[3,64,56], index: 5, kind: input, shape index: {}]
  %s6 = inlined_call_operand.vmem [shape: f32[1,56], index: 6, kind: input, shape index: {}]
  %s7 = inlined_call_operand.vmem [shape: f32[3,56,128], index: 7, kind: input, shape index: {}]
  %s8 = inlined_call_operand.vmem [shape: f32[1,128], index: 8, kind: input, shape index: {}]
  %s9 = inlined_call_operand.vmem [shape: f32[2,12,128], index: 9, kind: output, shape index: {}]
  %s10 = sld [smem:[#allocation0]]
  $region69: #{unet_upsampling_concat_block.1} parent=0
    _
  %s12 = ssub.s32 1, %s10
  %s13 = scalar_select 0, %s12, %s10
  loop: start=0, step=1, limit=4
  $region2: #{unet_upsampling_concat_block.1} parent=0 // loop_pre_header
    _
  $region3: #{unet_upsampling_concat_block.1} parent=0 // loop_header
    %s15 = sphi 0, %s19
    %p16 = scmp.ge.s32.totalorder %s15, 4
    %s25 = sphi 0, %s27
    %s28 = sphi 0, %s25
    %s29 = sphi 0, %s28
    %s45 = sphi 0, %s29
    %s51 = sphi 0, %s53
    %s54 = sphi 0, %s51
    %s55 = sphi 0, %s54
    %s71 = sphi 0, %s55
    %s75 = sphi 0, %s75
    %s77 = sphi 0, %s75
    %s78 = sphi 0, %s77
    %s92 = sphi 0, %s78
    %s96 = sphi 0, %s96
    %s98 = sphi 0, %s96
    %s99 = sphi 0, %s98
    %s113 = sphi 0, %s99
    %s117 = sphi 0, %s117
    %s119 = sphi 0, %s117
    %s120 = sphi 0, %s119
    %s134 = sphi 0, %s120
    %s138 = sphi 0, %s138
    %s140 = sphi 0, %s138
    %s141 = sphi 0, %s140
    %s155 = sphi 0, %s141
    %s159 = sphi 0, %s159
    %s161 = sphi 0, %s159
    %s162 = sphi 0, %s161
    %s176 = sphi 0, %s162
    %s180 = sphi 0, %s180
    %s182 = sphi 0, %s180
    %s183 = sphi 0, %s182
    %s197 = sphi 0, %s183
    %s201 = sphi 0, %s201
    %s203 = sphi 0, %s201
    %s204 = sphi 0, %s203
    %s218 = sphi 0, %s204
    %s224 = sphi 0, %s226
    %s227 = sphi 0, %s224
    %s228 = sphi 0, %s227
    %s244 = sphi 0, %s228
  $region4: #{unet_upsampling_concat_block.1} parent=0 // loop_header_branch
    %18 = sbr.rel (%p16) target = $region8
  $region5: #{unet_upsampling_concat_block.1} parent=0 // loop_body
    %s20 = ssub.s32 %s15, 1
    %s21 = ssub.s32 %s15, 2
    %s22 = sadd.s32 %s15, 1
    %s23 = ssub.s32 %s15, %s22
    %p24 = scmp.eq.s32.totalorder %s23, 0
    %s26 = sadd.s32 %s25, 1
    %s27 = scalar_select %p24, %s25, %s26
    %p30 = pneg %p24
    %p31 = scmp.eq.s32.totalorder %s15, 1
    %p32 = por %p30, %p31
    %p33 = scmp.ne.s32.totalorder %s25, %s28
    %p34 = scmp.eq.s32.totalorder %s15, 0
    %p35 = por %p33, %p34
    %p36 = scmp.ne.s32.totalorder %s25, %s28
    %p37 = scmp.eq.s32.totalorder %s20, 1
    %p38 = por %p36, %p37
    %p39 = scmp.ne.s32.totalorder %s28, %s29
    %p40 = scmp.eq.s32.totalorder %s20, 0
    %p41 = por %p39, %p40
    %p42 = scmp.ne.s32.totalorder %s28, %s29
    %p43 = scmp.eq.s32.totalorder %s21, 1
    %p44 = por %p42, %p43
    %p46 = scmp.ne.s32.totalorder %s29, %s45
    %p47 = scmp.eq.s32.totalorder %s21, 0
    %p48 = por %p46, %p47
    %s49 = ssub.s32 %s15, %s22
    %p50 = scmp.eq.s32.totalorder %s49, 0
    %s52 = sadd.s32 %s51, 1
    %s53 = scalar_select %p50, %s51, %s52
    %p56 = pneg %p50
    %p57 = scmp.eq.s32.totalorder %s15, 1
    %p58 = por %p56, %p57
    %p59 = scmp.ne.s32.totalorder %s51, %s54
    %p60 = scmp.eq.s32.totalorder %s15, 0
    %p61 = por %p59, %p60
    %p62 = scmp.ne.s32.totalorder %s51, %s54
    %p63 = scmp.eq.s32.totalorder %s20, 1
    %p64 = por %p62, %p63
    %p65 = scmp.ne.s32.totalorder %s54, %s55
    %p66 = scmp.eq.s32.totalorder %s20, 0
    %p67 = por %p65, %p66
    %p68 = scmp.ne.s32.totalorder %s54, %s55
    %p69 = scmp.eq.s32.totalorder %s21, 1
    %p70 = por %p68, %p69
    %p72 = scmp.ne.s32.totalorder %s55, %s71
    %p73 = scmp.eq.s32.totalorder %s21, 0
    %p74 = por %p72, %p73
    %s76 = sadd.s32 %s75, 1
    %p79 = scmp.eq.s32.totalorder %s15, 1
    %p80 = scmp.ne.s32.totalorder %s75, %s77
    %p81 = scmp.eq.s32.totalorder %s15, 0
    %p82 = por %p80, %p81
    %p83 = scmp.ne.s32.totalorder %s75, %s77
    %p84 = scmp.eq.s32.totalorder %s20, 1
    %p85 = por %p83, %p84
    %p86 = scmp.ne.s32.totalorder %s77, %s78
    %p87 = scmp.eq.s32.totalorder %s20, 0
    %p88 = por %p86, %p87
    %p89 = scmp.ne.s32.totalorder %s77, %s78
    %p90 = scmp.eq.s32.totalorder %s21, 1
    %p91 = por %p89, %p90
    %p93 = scmp.ne.s32.totalorder %s78, %s92
    %p94 = scmp.eq.s32.totalorder %s21, 0
    %p95 = por %p93, %p94
    %s97 = sadd.s32 %s96, 1
    %p100 = scmp.eq.s32.totalorder %s15, 1
    %p101 = scmp.ne.s32.totalorder %s96, %s98
    %p102 = scmp.eq.s32.totalorder %s15, 0
    %p103 = por %p101, %p102
    %p104 = scmp.ne.s32.totalorder %s96, %s98
    %p105 = scmp.eq.s32.totalorder %s20, 1
    %p106 = por %p104, %p105
    %p107 = scmp.ne.s32.totalorder %s98, %s99
    %p108 = scmp.eq.s32.totalorder %s20, 0
    %p109 = por %p107, %p108
    %p110 = scmp.ne.s32.totalorder %s98, %s99
    %p111 = scmp.eq.s32.totalorder %s21, 1
    %p112 = por %p110, %p111
    %p114 = scmp.ne.s32.totalorder %s99, %s113
    %p115 = scmp.eq.s32.totalorder %s21, 0
    %p116 = por %p114, %p115
    %s118 = sadd.s32 %s117, 1
    %p121 = scmp.eq.s32.totalorder %s15, 1
    %p122 = scmp.ne.s32.totalorder %s117, %s119
    %p123 = scmp.eq.s32.totalorder %s15, 0
    %p124 = por %p122, %p123
    %p125 = scmp.ne.s32.totalorder %s117, %s119
    %p126 = scmp.eq.s32.totalorder %s20, 1
    %p127 = por %p125, %p126
    %p128 = scmp.ne.s32.totalorder %s119, %s120
    %p129 = scmp.eq.s32.totalorder %s20, 0
    %p130 = por %p128, %p129
    %p131 = scmp.ne.s32.totalorder %s119, %s120
    %p132 = scmp.eq.s32.totalorder %s21, 1
    %p133 = por %p131, %p132
    %p135 = scmp.ne.s32.totalorder %s120, %s134
    %p136 = scmp.eq.s32.totalorder %s21, 0
    %p137 = por %p135, %p136
    %s139 = sadd.s32 %s138, 1
    %p142 = scmp.eq.s32.totalorder %s15, 1
    %p143 = scmp.ne.s32.totalorder %s138, %s140
    %p144 = scmp.eq.s32.totalorder %s15, 0
    %p145 = por %p143, %p144
    %p146 = scmp.ne.s32.totalorder %s138, %s140
    %p147 = scmp.eq.s32.totalorder %s20, 1
    %p148 = por %p146, %p147
    %p149 = scmp.ne.s32.totalorder %s140, %s141
    %p150 = scmp.eq.s32.totalorder %s20, 0
    %p151 = por %p149, %p150
    %p152 = scmp.ne.s32.totalorder %s140, %s141
    %p153 = scmp.eq.s32.totalorder %s21, 1
    %p154 = por %p152, %p153
    %p156 = scmp.ne.s32.totalorder %s141, %s155
    %p157 = scmp.eq.s32.totalorder %s21, 0
    %p158 = por %p156, %p157
    %s160 = sadd.s32 %s159, 1
    %p163 = scmp.eq.s32.totalorder %s15, 1
    %p164 = scmp.ne.s32.totalorder %s159, %s161
    %p165 = scmp.eq.s32.totalorder %s15, 0
    %p166 = por %p164, %p165
    %p167 = scmp.ne.s32.totalorder %s159, %s161
    %p168 = scmp.eq.s32.totalorder %s20, 1
    %p169 = por %p167, %p168
    %p170 = scmp.ne.s32.totalorder %s161, %s162
    %p171 = scmp.eq.s32.totalorder %s20, 0
    %p172 = por %p170, %p171
    %p173 = scmp.ne.s32.totalorder %s161, %s162
    %p174 = scmp.eq.s32.totalorder %s21, 1
    %p175 = por %p173, %p174
    %p177 = scmp.ne.s32.totalorder %s162, %s176
    %p178 = scmp.eq.s32.totalorder %s21, 0
    %p179 = por %p177, %p178
    %s181 = sadd.s32 %s180, 1
    %p184 = scmp.eq.s32.totalorder %s15, 1
    %p185 = scmp.ne.s32.totalorder %s180, %s182
    %p186 = scmp.eq.s32.totalorder %s15, 0
    %p187 = por %p185, %p186
    %p188 = scmp.ne.s32.totalorder %s180, %s182
    %p189 = scmp.eq.s32.totalorder %s20, 1
    %p190 = por %p188, %p189
    %p191 = scmp.ne.s32.totalorder %s182, %s183
    %p192 = scmp.eq.s32.totalorder %s20, 0
    %p193 = por %p191, %p192
    %p194 = scmp.ne.s32.totalorder %s182, %s183
    %p195 = scmp.eq.s32.totalorder %s21, 1
    %p196 = por %p194, %p195
    %p198 = scmp.ne.s32.totalorder %s183, %s197
    %p199 = scmp.eq.s32.totalorder %s21, 0
    %p200 = por %p198, %p199
    %s202 = sadd.s32 %s201, 1
    %p205 = scmp.eq.s32.totalorder %s15, 1
    %p206 = scmp.ne.s32.totalorder %s201, %s203
    %p207 = scmp.eq.s32.totalorder %s15, 0
    %p208 = por %p206, %p207
    %p209 = scmp.ne.s32.totalorder %s201, %s203
    %p210 = scmp.eq.s32.totalorder %s20, 1
    %p211 = por %p209, %p210
    %p212 = scmp.ne.s32.totalorder %s203, %s204
    %p213 = scmp.eq.s32.totalorder %s20, 0
    %p214 = por %p212, %p213
    %p215 = scmp.ne.s32.totalorder %s203, %s204
    %p216 = scmp.eq.s32.totalorder %s21, 1
    %p217 = por %p215, %p216
    %p219 = scmp.ne.s32.totalorder %s204, %s218
    %p220 = scmp.eq.s32.totalorder %s21, 0
    %p221 = por %p219, %p220
    %s222 = ssub.s32 %s15, %s22
    %p223 = scmp.eq.s32.totalorder %s222, 0
    %s225 = sadd.s32 %s224, 1
    %s226 = scalar_select %p223, %s224, %s225
    %p229 = pneg %p223
    %p230 = scmp.eq.s32.totalorder %s15, 1
    %p231 = por %p229, %p230
    %p232 = scmp.ne.s32.totalorder %s224, %s227
    %p233 = scmp.eq.s32.totalorder %s15, 0
    %p234 = por %p232, %p233
    %p235 = scmp.ne.s32.totalorder %s224, %s227
    %p236 = scmp.eq.s32.totalorder %s20, 1
    %p237 = por %p235, %p236
    %p238 = scmp.ne.s32.totalorder %s227, %s228
    %p239 = scmp.eq.s32.totalorder %s20, 0
    %p240 = por %p238, %p239
    %p241 = scmp.ne.s32.totalorder %s227, %s228
    %p242 = scmp.eq.s32.totalorder %s21, 1
    %p243 = por %p241, %p242
    %p245 = scmp.ne.s32.totalorder %s228, %s244
    %p246 = scmp.eq.s32.totalorder %s21, 0
    %p247 = por %p245, %p246
    %p248 = scmp.le.s32.totalorder 1, %s15
    %p249 = scmp.lt.s32.totalorder %s15, 3
    %p250 = pnand %p248, %p249
    %p251 = pneg %p250
    // Predicated region
    $region9: #{unet_upsampling_concat_block.1} parent=5 // pred_check
      _
    $region10: #{unet_upsampling_concat_block.1} parent=5 // pred_check_branch
      %253 = sbr.rel (%p250) target = $region12
    $region11: #{unet_upsampling_concat_block.1} parent=5 // pred_region
      %s254 = ssub.s32 %s15, 1
      // Predicated region
      $region13: #{unet_upsampling_concat_block.1} parent=11 // pred_check
        %p255 = pneg %p88
      $region14: #{unet_upsampling_concat_block.1} parent=11 // pred_check_branch
        %257 = sbr.rel (%p255) target = $region16
      $region15: #{unet_upsampling_concat_block.1} parent=11 // pred_region
        _
      $region16: #{unet_upsampling_concat_block.1} parent=11 // pred_fallthru
        _
      // Predicated region
      $region17: #{unet_upsampling_concat_block.1} parent=11 // pred_check
        %p258 = pneg %p109
      $region18: #{unet_upsampling_concat_block.1} parent=11 // pred_check_branch
        %260 = sbr.rel (%p258) target = $region20
      $region19: #{unet_upsampling_concat_block.1} parent=11 // pred_region
        _
      $region20: #{unet_upsampling_concat_block.1} parent=11 // pred_fallthru
        _
      // Predicated region
      $region21: #{unet_upsampling_concat_block.1} parent=11 // pred_check
        %p261 = pneg %p130
      $region22: #{unet_upsampling_concat_block.1} parent=11 // pred_check_branch
        %263 = sbr.rel (%p261) target = $region24
      $region23: #{unet_upsampling_concat_block.1} parent=11 // pred_region
        _
      $region24: #{unet_upsampling_concat_block.1} parent=11 // pred_fallthru
        _
      // Predicated region
      $region25: #{unet_upsampling_concat_block.1} parent=11 // pred_check
        %p264 = pneg %p151
      $region26: #{unet_upsampling_concat_block.1} parent=11 // pred_check_branch
        %266 = sbr.rel (%p264) target = $region28
      $region27: #{unet_upsampling_concat_block.1} parent=11 // pred_region
        _
      $region28: #{unet_upsampling_concat_block.1} parent=11 // pred_fallthru
        _
      // Predicated region
      $region29: #{unet_upsampling_concat_block.1} parent=11 // pred_check
        %p267 = pneg %p172
      $region30: #{unet_upsampling_concat_block.1} parent=11 // pred_check_branch
        %269 = sbr.rel (%p267) target = $region32
      $region31: #{unet_upsampling_concat_block.1} parent=11 // pred_region
        _
      $region32: #{unet_upsampling_concat_block.1} parent=11 // pred_fallthru
        _
      // Predicated region
      $region33: #{unet_upsampling_concat_block.1} parent=11 // pred_check
        %p270 = pneg %p193
      $region34: #{unet_upsampling_concat_block.1} parent=11 // pred_check_branch
        %272 = sbr.rel (%p270) target = $region36
      $region35: #{unet_upsampling_concat_block.1} parent=11 // pred_region
        _
      $region36: #{unet_upsampling_concat_block.1} parent=11 // pred_fallthru
        _
      // Predicated region
      $region37: #{unet_upsampling_concat_block.1} parent=11 // pred_check
        %p273 = pneg %p214
      $region38: #{unet_upsampling_concat_block.1} parent=11 // pred_check_branch
        %275 = sbr.rel (%p273) target = $region40
      $region39: #{unet_upsampling_concat_block.1} parent=11 // pred_region
        _
      $region40: #{unet_upsampling_concat_block.1} parent=11 // pred_fallthru
        _
    $region12: #{unet_upsampling_concat_block.1} parent=5 // pred_fallthru
      _
    %p276 = scmp.lt.s32.totalorder %s15, 2
    // Predicated region
    $region41: #{unet_upsampling_concat_block.1} parent=5 // pred_check
      %p277 = pneg %p276
    $region42: #{unet_upsampling_concat_block.1} parent=5 // pred_check_branch
      %279 = sbr.rel (%p277) target = $region44
    $region43: #{unet_upsampling_concat_block.1} parent=5 // pred_region
      // Predicated region
      $region45: #{unet_upsampling_concat_block.1} parent=43 // pred_check
        %p280 = pneg %p35
      $region46: #{unet_upsampling_concat_block.1} parent=43 // pred_check_branch
        %282 = sbr.rel (%p280) target = $region48
      $region47: #{unet_upsampling_concat_block.1} parent=43 // pred_region
        %p283 = scmp.lt.s32.totalorder %s15, 1
        %s284 = scalar_select %p283, %s15, 1
        %s285 = smul.addr %s284, 8
        %s286 = scalar_lea.vmem %s0, %s285
      $region48: #{unet_upsampling_concat_block.1} parent=43 // pred_fallthru
        _
      // Predicated region
      $region49: #{unet_upsampling_concat_block.1} parent=43 // pred_check
        %p287 = pneg %p61
      $region50: #{unet_upsampling_concat_block.1} parent=43 // pred_check_branch
        %289 = sbr.rel (%p287) target = $region52
      $region51: #{unet_upsampling_concat_block.1} parent=43 // pred_region
        %p290 = scmp.lt.s32.totalorder %s15, 1
        %s291 = scalar_select %p290, %s15, 1
        %s292 = smul.addr %s291, 2
        %s293 = smul.addr %s292, 8
        %s294 = scalar_lea.vmem %s1, %s293
      $region52: #{unet_upsampling_concat_block.1} parent=43 // pred_fallthru
        _
    $region44: #{unet_upsampling_concat_block.1} parent=5 // pred_fallthru
      _
    %p295 = scmp.le.s32.totalorder 1, %s15
    %p296 = scmp.lt.s32.totalorder %s15, 3
    %p297 = pnand %p295, %p296
    %p298 = pneg %p297
    // Predicated region
    $region53: #{unet_upsampling_concat_block.1} parent=5 // pred_check
      _
    $region54: #{unet_upsampling_concat_block.1} parent=5 // pred_check_branch
      %300 = sbr.rel (%p297) target = $region56
    $region55: #{unet_upsampling_concat_block.1} parent=5 // pred_region
      %s301 = ssub.s32 %s15, 1
      %p302 = scmp.lt.s32.totalorder %s20, 1
      %s303 = scalar_select %p302, %s20, 1
      %s304 = smul.addr %s303, 8
      %s305 = scalar_lea.vmem %s0, %s304
      %p306 = pneg %p41
      %p307 = pneg %p38
      %p308 = scmp.lt.s32.totalorder %s20, 1
      %s309 = scalar_select %p308, %s20, 1
      %s310 = smul.addr %s309, 2
      %s311 = smul.addr %s310, 8
      %s312 = scalar_lea.vmem %s1, %s311
      %p313 = pneg %p67
      %p314 = pneg %p64
      %p315 = pneg %p88
      %p316 = pneg %p85
      %p317 = pneg %p109
      %p318 = pneg %p106
      %p319 = pneg %p130
      %p320 = pneg %p127
      %p321 = pneg %p151
      %p322 = pneg %p148
      %p323 = pneg %p172
      %p324 = pneg %p169
      %p325 = pneg %p193
      %p326 = pneg %p190
      %p327 = pneg %p214
      %p328 = pneg %p211
      %p329 = pneg %p240
      %p330 = pneg %p237
      %p331 = scmp.lt.s32.totalorder %s20, 1
      %s332 = scalar_select %p331, %s20, 1
      %s333 = smul.addr %s332, 2
      %s334 = smul.addr %s333, 8
      %s335 = scalar_lea.vmem %s9, %s334
      %p336 = scmp.lt.s32.totalorder %s20, 1
      %s337 = scalar_select %p336, %s20, 1
      %s338 = smul.addr %s337, 8
      %s339 = scalar_lea.vmem %s0, %s338
      %p340 = scmp.lt.s32.totalorder %s20, 1
      %s341 = scalar_select %p340, %s20, 1
      %s342 = smul.addr %s341, 2
      %s343 = smul.addr %s342, 8
      %s344 = scalar_lea.vmem %s1, %s343
      %p345 = scmp.lt.s32.totalorder %s20, 1
      %s346 = scalar_select %p345, %s20, 1
      %s347 = smul.addr %s346, 2
      %s348 = smul.addr %s347, 8
      %s349 = scalar_lea.vmem %s9, %s348
      %v350 = vld [vmem:[%s339] sm:$0xff]
      %v351 = vld [vmem:[%s344] sm:$0xff]
      %v352 = vld [vmem:[%s344 + $0x8] sm:$0xff]
      %v353 = vld [vmem:[%s2] sm:$0xff]
      %v354 = vld [vmem:[%s2 + $0x8] sm:$0xff]
      %v355 = vld [vmem:[%s2 + $0x10] sm:$0xff]
      %v356 = vld [vmem:[%s2 + $0x18] sm:$0xff]
      %v357 = vld [vmem:[%s2 + $0x20] sm:$0xff]
      %v358 = vld [vmem:[%s2 + $0x28] sm:$0xff]
      %v359 = vld [vmem:[%s2 + $0x30] sm:$0xff]
      %v360 = vld [vmem:[%s2 + $0x38] sm:$0xff]
      %vm361 = vcmask 523264
      %v363 = vsel %vm361, %v350, 0
      %365 = vmatprep.subr.mxu0 0.0
      %366 = vmatpush1.msra.mxu0 0.0
      %367 = vmatprep.subr.mxu0 0.0
      %368 = vmatpush1.msra.mxu0 0.0
      %369 = vmatprep.subr.mxu0 0.0
      %370 = vmatpush1.msra.mxu0 0.0
      %371 = vmatprep.subr.mxu0 0.0
      %372 = vmatpush1.msra.mxu0 0.0
      %373 = vmatprep.subr.mxu0 0.0
      %374 = vmatpush1.msra.mxu0 0.0
      %375 = vmatprep.subr.mxu0 0.0
      %376 = vmatpush1.msra.mxu0 0.0
      %377 = vmatprep.subr.mxu0 0.0
      %378 = vmatpush1.msra.mxu0 0.0
      %379 = vmatprep.subr.mxu0 0.0
      %380 = vmatpush1.msra.mxu0 0.0
      %381 = vmatprep.subr.mxu0 0.0
      %382 = vmatpush1.msra.mxu0 %v360
      %383 = vmatprep.subr.mxu0 0.0
      %384 = vmatpush1.msra.mxu0 %v359
      %385 = vmatprep.subr.mxu0 0.0
      %386 = vmatpush1.msra.mxu0 %v358
      %387 = vmatprep.subr.mxu0 0.0
      %388 = vmatpush1.msra.mxu0 %v357
      %389 = vmatprep.subr.mxu0 0.0
      %390 = vmatpush1.msra.mxu0 %v356
      %391 = vmatprep.subr.mxu0 0.0
      %392 = vmatpush1.msra.mxu0 %v355
      %393 = vmatprep.subr.mxu0 0.0
      %394 = vmatpush1.msra.mxu0 %v354
      %395 = vmatprep.subr.mxu0 0.0
      %396 = vmatpush1.msra.mxu0 %v353
      %397 = vmatprep.subr.mxu0 0.0
      %398 = vmatpush2.msra.mxu0 0.0
      %399 = vmatprep.subr.mxu0 0.0
      %400 = vmatpush2.msra.mxu0 0.0
      %401 = vmatprep.subr.mxu0 0.0
      %402 = vmatpush2.msra.mxu0 0.0
      %403 = vmatprep.subr.mxu0 0.0
      %404 = vmatpush2.msra.mxu0 0.0
      %405 = vmatprep.subr.mxu0 0.0
      %406 = vmatpush2.msra.mxu0 0.0
      %407 = vmatprep.subr.mxu0 0.0
      %408 = vmatpush2.msra.mxu0 0.0
      %409 = vmatprep.subr.mxu0 0.0
      %410 = vmatpush2.msra.mxu0 0.0
      %411 = vmatprep.subr.mxu0 0.0
      %412 = vmatpush2.msra.mxu0 0.0
      %413 = vmatprep.subr.mxu0 0.0
      %414 = vmatpush2.msra.mxu0 0.0
      %415 = vmatprep.subr.mxu0 0.0
      %416 = vmatpush2.msra.mxu0 0.0
      %417 = vmatprep.subr.mxu0 0.0
      %418 = vmatpush2.msra.mxu0 0.0
      %419 = vmatprep.subr.mxu0 0.0
      %420 = vmatpush2.msra.mxu0 0.0
      %421 = vmatprep.subr.mxu0 0.0
      %422 = vmatpush2.msra.mxu0 0.0
      %423 = vmatprep.subr.mxu0 0.0
      %424 = vmatpush2.msra.mxu0 0.0
      %425 = vmatprep.subr.mxu0 0.0
      %426 = vmatpush2.msra.mxu0 0.0
      %427 = vmatprep.subr.mxu0 0.0
      %428 = vmatpush2.msra.mxu0 0.0
      %429 = vmatprep.mubr.f32.mxu0 0.0
      %430 = vmatmul.mubr.f32.gmra.mxu0 %v363
      %v431 = vpop.f32.mrf.mxu0
      %v432 = vadd.f32 0.0, %v431
      %v433 = vpop.f32.mrf.mxu0
      %434 = vdwg.mxu0
      %s435 = scalar_lea.vmem %s2, 64
      %v436 = vld [vmem:[%s435] sm:$0xff]
      %v437 = vld [vmem:[%s435 + $0x8] sm:$0xff]
      %v438 = vld [vmem:[%s435 + $0x10] sm:$0xff]
      %v439 = vld [vmem:[%s435 + $0x18] sm:$0xff]
      %v440 = vld [vmem:[%s435 + $0x20] sm:$0xff]
      %v441 = vld [vmem:[%s435 + $0x28] sm:$0xff]
      %v442 = vld [vmem:[%s435 + $0x30] sm:$0xff]
      %v443 = vld [vmem:[%s435 + $0x38] sm:$0xff]
      %444 = vmatprep.subr.mxu0 0.0
      %445 = vmatpush1.msra.mxu0 0.0
      %446 = vmatprep.subr.mxu0 0.0
      %447 = vmatpush1.msra.mxu0 0.0
      %448 = vmatprep.subr.mxu0 0.0
      %449 = vmatpush1.msra.mxu0 0.0
      %450 = vmatprep.subr.mxu0 0.0
      %451 = vmatpush1.msra.mxu0 0.0
      %452 = vmatprep.subr.mxu0 0.0
      %453 = vmatpush1.msra.mxu0 0.0
      %454 = vmatprep.subr.mxu0 0.0
      %455 = vmatpush1.msra.mxu0 0.0
      %456 = vmatprep.subr.mxu0 0.0
      %457 = vmatpush1.msra.mxu0 0.0
      %458 = vmatprep.subr.mxu0 0.0
      %459 = vmatpush1.msra.mxu0 0.0
      %460 = vmatprep.subr.mxu0 0.0
      %461 = vmatpush1.msra.mxu0 %v443
      %462 = vmatprep.subr.mxu0 0.0
      %463 = vmatpush1.msra.mxu0 %v442
      %464 = vmatprep.subr.mxu0 0.0
      %465 = vmatpush1.msra.mxu0 %v441
      %466 = vmatprep.subr.mxu0 0.0
      %467 = vmatpush1.msra.mxu0 %v440
      %468 = vmatprep.subr.mxu0 0.0
      %469 = vmatpush1.msra.mxu0 %v439
      %470 = vmatprep.subr.mxu0 0.0
      %471 = vmatpush1.msra.mxu0 %v438
      %472 = vmatprep.subr.mxu0 0.0
      %473 = vmatpush1.msra.mxu0 %v437
      %474 = vmatprep.subr.mxu0 0.0
      %475 = vmatpush1.msra.mxu0 %v436
      %476 = vmatprep.subr.mxu0 0.0
      %477 = vmatpush2.msra.mxu0 0.0
      %478 = vmatprep.subr.mxu0 0.0
      %479 = vmatpush2.msra.mxu0 0.0
      %480 = vmatprep.subr.mxu0 0.0
      %481 = vmatpush2.msra.mxu0 0.0
      %482 = vmatprep.subr.mxu0 0.0
      %483 = vmatpush2.msra.mxu0 0.0
      %484 = vmatprep.subr.mxu0 0.0
      %485 = vmatpush2.msra.mxu0 0.0
      %486 = vmatprep.subr.mxu0 0.0
      %487 = vmatpush2.msra.mxu0 0.0
      %488 = vmatprep.subr.mxu0 0.0
      %489 = vmatpush2.msra.mxu0 0.0
      %490 = vmatprep.subr.mxu0 0.0
      %491 = vmatpush2.msra.mxu0 0.0
      %492 = vmatprep.subr.mxu0 0.0
      %493 = vmatpush2.msra.mxu0 0.0
      %494 = vmatprep.subr.mxu0 0.0
      %495 = vmatpush2.msra.mxu0 0.0
      %496 = vmatprep.subr.mxu0 0.0
      %497 = vmatpush2.msra.mxu0 0.0
      %498 = vmatprep.subr.mxu0 0.0
      %499 = vmatpush2.msra.mxu0 0.0
      %500 = vmatprep.subr.mxu0 0.0
      %501 = vmatpush2.msra.mxu0 0.0
      %502 = vmatprep.subr.mxu0 0.0
      %503 = vmatpush2.msra.mxu0 0.0
      %504 = vmatprep.subr.mxu0 0.0
      %505 = vmatpush2.msra.mxu0 0.0
      %506 = vmatprep.subr.mxu0 0.0
      %507 = vmatpush2.msra.mxu0 0.0
      %508 = vmatprep.mubr.f32.mxu0 0.0
      %509 = vmatmul.mubr.f32.gmra.mxu0 %v363
      %v510 = vpop.f32.mrf.mxu0
      %v511 = vadd.f32 0.0, %v510
      %v512 = vpop.f32.mrf.mxu0
      %513 = vdwg.mxu0
      %v514 = vld [vmem:[%s3] sm:$0xff]
      %v515 = vld [vmem:[%s3 + $0x8] sm:$0xff]
      %s516 = scalar_lea.vmem %s3, 16
      %v517 = vld [vmem:[%s516] sm:$0xff]
      %v518 = vld [vmem:[%s516 + $0x8] sm:$0xff]
      %vm519 = vcmask 64512
      %v521 = vsel %vm519, %v517, 0
      %v524 = vsel %vm519, %v518, 0
      %526 = vmatprep.subr.mxu0 0.0
      %527 = vmatpush1.msra.mxu0 0.0
      %528 = vmatprep.subr.mxu0 0.0
      %529 = vmatpush1.msra.mxu0 0.0
      %530 = vmatprep.subr.mxu0 0.0
      %531 = vmatpush1.msra.mxu0 0.0
      %532 = vmatprep.subr.mxu0 0.0
      %533 = vmatpush1.msra.mxu0 0.0
      %534 = vmatprep.subr.mxu0 0.0
      %535 = vmatpush1.msra.mxu0 0.0
      %536 = vmatprep.subr.mxu0 0.0
      %537 = vmatpush1.msra.mxu0 0.0
      %538 = vmatprep.subr.mxu0 0.0
      %539 = vmatpush1.msra.mxu0 0.0
      %540 = vmatprep.subr.mxu0 0.0
      %541 = vmatpush1.msra.mxu0 0.0
      %542 = vmatprep.subr.mxu0 0.0
      %543 = vmatpush1.msra.mxu0 0.0
      %544 = vmatprep.subr.mxu0 0.0
      %545 = vmatpush1.msra.mxu0 0.0
      %546 = vmatprep.subr.mxu0 0.0
      %547 = vmatpush1.msra.mxu0 0.0
      %548 = vmatprep.subr.mxu0 0.0
      %549 = vmatpush1.msra.mxu0 0.0
      %550 = vmatprep.subr.mxu0 0.0
      %551 = vmatpush1.msra.mxu0 0.0
      %552 = vmatprep.subr.mxu0 0.0
      %553 = vmatpush1.msra.mxu0 0.0
      %554 = vmatprep.subr.mxu0 0.0
      %555 = vmatpush1.msra.mxu0 0.0
      %556 = vmatprep.subr.mxu0 0.0
      %557 = vmatpush1.msra.mxu0 %v511
      %558 = vmatprep.subr.mxu0 0.0
      %559 = vmatpush2.msra.mxu0 0.0
      %560 = vmatprep.subr.mxu0 0.0
      %561 = vmatpush2.msra.mxu0 0.0
      %562 = vmatprep.subr.mxu0 0.0
      %563 = vmatpush2.msra.mxu0 0.0
      %564 = vmatprep.subr.mxu0 0.0
      %565 = vmatpush2.msra.mxu0 0.0
      %566 = vmatprep.subr.mxu0 0.0
      %567 = vmatpush2.msra.mxu0 0.0
      %568 = vmatprep.subr.mxu0 0.0
      %569 = vmatpush2.msra.mxu0 0.0
      %570 = vmatprep.subr.mxu0 0.0
      %571 = vmatpush2.msra.mxu0 0.0
      %572 = vmatprep.subr.mxu0 0.0
      %573 = vmatpush2.msra.mxu0 0.0
      %574 = vmatprep.subr.mxu0 0.0
      %575 = vmatpush2.msra.mxu0 0.0
      %576 = vmatprep.subr.mxu0 0.0
      %577 = vmatpush2.msra.mxu0 0.0
      %578 = vmatprep.subr.mxu0 0.0
      %579 = vmatpush2.msra.mxu0 0.0
      %580 = vmatprep.subr.mxu0 0.0
      %581 = vmatpush2.msra.mxu0 0.0
      %582 = vmatprep.subr.mxu0 0.0
      %583 = vmatpush2.msra.mxu0 0.0
      %584 = vmatprep.subr.mxu0 0.0
      %585 = vmatpush2.msra.mxu0 0.0
      %586 = vmatprep.subr.mxu0 0.0
      %587 = vmatpush2.msra.mxu0 0.0
      %588 = vmatprep.subr.mxu0 0.0
      %589 = vmatpush2.msra.mxu0 0.0
      %590 = vmatprep.mubr.f32.mxu0 0.0
      %591 = vmatmul.mubr.f32.gmra.mxu0 %v521
      %v592 = vpop.f32.mrf.mxu0
      %v593 = vadd.f32 0.0, %v592
      %v594 = vpop.f32.mrf.mxu0
      %595 = vmatprep.mubr.f32.mxu0 0.0
      %596 = vmatmul.mubr.f32.gmra.mxu0 %v524
      %v597 = vpop.f32.mrf.mxu0
      %v598 = vadd.f32 0.0, %v597
      %v599 = vpop.f32.mrf.mxu0
      %600 = vdwg.mxu0
      %v602 = vsel %vm519, %v514, 0
      %v605 = vsel %vm519, %v515, 0
      %607 = vmatprep.subr.mxu0 0.0
      %608 = vmatpush1.msra.mxu0 0.0
      %609 = vmatprep.subr.mxu0 0.0
      %610 = vmatpush1.msra.mxu0 0.0
      %611 = vmatprep.subr.mxu0 0.0
      %612 = vmatpush1.msra.mxu0 0.0
      %613 = vmatprep.subr.mxu0 0.0
      %614 = vmatpush1.msra.mxu0 0.0
      %615 = vmatprep.subr.mxu0 0.0
      %616 = vmatpush1.msra.mxu0 0.0
      %617 = vmatprep.subr.mxu0 0.0
      %618 = vmatpush1.msra.mxu0 0.0
      %619 = vmatprep.subr.mxu0 0.0
      %620 = vmatpush1.msra.mxu0 0.0
      %621 = vmatprep.subr.mxu0 0.0
      %622 = vmatpush1.msra.mxu0 0.0
      %623 = vmatprep.subr.mxu0 0.0
      %624 = vmatpush1.msra.mxu0 0.0
      %625 = vmatprep.subr.mxu0 0.0
      %626 = vmatpush1.msra.mxu0 0.0
      %627 = vmatprep.subr.mxu0 0.0
      %628 = vmatpush1.msra.mxu0 0.0
      %629 = vmatprep.subr.mxu0 0.0
      %630 = vmatpush1.msra.mxu0 0.0
      %631 = vmatprep.subr.mxu0 0.0
      %632 = vmatpush1.msra.mxu0 0.0
      %633 = vmatprep.subr.mxu0 0.0
      %634 = vmatpush1.msra.mxu0 0.0
      %635 = vmatprep.subr.mxu0 0.0
      %636 = vmatpush1.msra.mxu0 0.0
      %637 = vmatprep.subr.mxu0 0.0
      %638 = vmatpush1.msra.mxu0 %v432
      %639 = vmatprep.subr.mxu0 0.0
      %640 = vmatpush2.msra.mxu0 0.0
      %641 = vmatprep.subr.mxu0 0.0
      %642 = vmatpush2.msra.mxu0 0.0
      %643 = vmatprep.subr.mxu0 0.0
      %644 = vmatpush2.msra.mxu0 0.0
      %645 = vmatprep.subr.mxu0 0.0
      %646 = vmatpush2.msra.mxu0 0.0
      %647 = vmatprep.subr.mxu0 0.0
      %648 = vmatpush2.msra.mxu0 0.0
      %649 = vmatprep.subr.mxu0 0.0
      %650 = vmatpush2.msra.mxu0 0.0
      %651 = vmatprep.subr.mxu0 0.0
      %652 = vmatpush2.msra.mxu0 0.0
      %653 = vmatprep.subr.mxu0 0.0
      %654 = vmatpush2.msra.mxu0 0.0
      %655 = vmatprep.subr.mxu0 0.0
      %656 = vmatpush2.msra.mxu0 0.0
      %657 = vmatprep.subr.mxu0 0.0
      %658 = vmatpush2.msra.mxu0 0.0
      %659 = vmatprep.subr.mxu0 0.0
      %660 = vmatpush2.msra.mxu0 0.0
      %661 = vmatprep.subr.mxu0 0.0
      %662 = vmatpush2.msra.mxu0 0.0
      %663 = vmatprep.subr.mxu0 0.0
      %664 = vmatpush2.msra.mxu0 0.0
      %665 = vmatprep.subr.mxu0 0.0
      %666 = vmatpush2.msra.mxu0 0.0
      %667 = vmatprep.subr.mxu0 0.0
      %668 = vmatpush2.msra.mxu0 0.0
      %669 = vmatprep.subr.mxu0 0.0
      %670 = vmatpush2.msra.mxu0 0.0
      %671 = vmatprep.mubr.f32.mxu0 0.0
      %672 = vmatmul.mubr.f32.gmra.mxu0 %v602
      %v673 = vpop.f32.mrf.mxu0
      %v674 = vadd.f32 %v593, %v673
      %v675 = vpop.f32.mrf.mxu0
      %676 = vmatprep.mubr.f32.mxu0 0.0
      %677 = vmatmul.mubr.f32.gmra.mxu0 %v605
      %v678 = vpop.f32.mrf.mxu0
      %v679 = vadd.f32 %v598, %v678
      %v680 = vpop.f32.mrf.mxu0
      %681 = vdwg.mxu0
      %v682 = vld [vmem:[%s4] sm:$0xff]
      %v683 = vld [vmem:[%s4 + $0x8] sm:$0xff]
      %v684 = vld [vmem:[%s4 + $0x10] sm:$0xff]
      %v685 = vld [vmem:[%s4 + $0x18] sm:$0xff]
      %v686 = vld [vmem:[%s4 + $0x20] sm:$0xff]
      %v687 = vld [vmem:[%s4 + $0x28] sm:$0xff]
      %v688 = vld [vmem:[%s4 + $0x30] sm:$0xff]
      %v689 = vld [vmem:[%s4 + $0x38] sm:$0xff]
      %v690 = vld [vmem:[%s5] sm:$0xff]
      %v691 = vld [vmem:[%s5 + $0x8] sm:$0xff]
      %v692 = vld [vmem:[%s5 + $0x10] sm:$0xff]
      %v693 = vld [vmem:[%s5 + $0x18] sm:$0xff]
      %v694 = vld [vmem:[%s5 + $0x20] sm:$0xff]
      %v695 = vld [vmem:[%s5 + $0x28] sm:$0xff]
      %v696 = vld [vmem:[%s5 + $0x30] sm:$0xff]
      %v697 = vld [vmem:[%s5 + $0x38] sm:$0xff]
      %v699 = vsel %vm361, %v351, 0
      %v702 = vsel %vm361, %v352, 0
      %704 = vmatprep.subr.mxu0 0.0
      %705 = vmatpush1.msra.mxu0 0.0
      %706 = vmatprep.subr.mxu0 0.0
      %707 = vmatpush1.msra.mxu0 0.0
      %708 = vmatprep.subr.mxu0 0.0
      %709 = vmatpush1.msra.mxu0 0.0
      %710 = vmatprep.subr.mxu0 0.0
      %711 = vmatpush1.msra.mxu0 0.0
      %712 = vmatprep.subr.mxu0 0.0
      %713 = vmatpush1.msra.mxu0 0.0
      %714 = vmatprep.subr.mxu0 0.0
      %715 = vmatpush1.msra.mxu0 0.0
      %716 = vmatprep.subr.mxu0 0.0
      %717 = vmatpush1.msra.mxu0 0.0
      %718 = vmatprep.subr.mxu0 0.0
      %719 = vmatpush1.msra.mxu0 0.0
      %720 = vmatprep.subr.mxu0 0.0
      %721 = vmatpush1.msra.mxu0 %v697
      %722 = vmatprep.subr.mxu0 0.0
      %723 = vmatpush1.msra.mxu0 %v696
      %724 = vmatprep.subr.mxu0 0.0
      %725 = vmatpush1.msra.mxu0 %v695
      %726 = vmatprep.subr.mxu0 0.0
      %727 = vmatpush1.msra.mxu0 %v694
      %728 = vmatprep.subr.mxu0 0.0
      %729 = vmatpush1.msra.mxu0 %v693
      %730 = vmatprep.subr.mxu0 0.0
      %731 = vmatpush1.msra.mxu0 %v692
      %732 = vmatprep.subr.mxu0 0.0
      %733 = vmatpush1.msra.mxu0 %v691
      %734 = vmatprep.subr.mxu0 0.0
      %735 = vmatpush1.msra.mxu0 %v690
      %736 = vmatprep.subr.mxu0 0.0
      %737 = vmatpush2.msra.mxu0 0.0
      %738 = vmatprep.subr.mxu0 0.0
      %739 = vmatpush2.msra.mxu0 0.0
      %740 = vmatprep.subr.mxu0 0.0
      %741 = vmatpush2.msra.mxu0 0.0
      %742 = vmatprep.subr.mxu0 0.0
      %743 = vmatpush2.msra.mxu0 0.0
      %744 = vmatprep.subr.mxu0 0.0
      %745 = vmatpush2.msra.mxu0 0.0
      %746 = vmatprep.subr.mxu0 0.0
      %747 = vmatpush2.msra.mxu0 0.0
      %748 = vmatprep.subr.mxu0 0.0
      %749 = vmatpush2.msra.mxu0 0.0
      %750 = vmatprep.subr.mxu0 0.0
      %751 = vmatpush2.msra.mxu0 0.0
      %752 = vmatprep.subr.mxu0 0.0
      %753 = vmatpush2.msra.mxu0 0.0
      %754 = vmatprep.subr.mxu0 0.0
      %755 = vmatpush2.msra.mxu0 0.0
      %756 = vmatprep.subr.mxu0 0.0
      %757 = vmatpush2.msra.mxu0 0.0
      %758 = vmatprep.subr.mxu0 0.0
      %759 = vmatpush2.msra.mxu0 0.0
      %760 = vmatprep.subr.mxu0 0.0
      %761 = vmatpush2.msra.mxu0 0.0
      %762 = vmatprep.subr.mxu0 0.0
      %763 = vmatpush2.msra.mxu0 0.0
      %764 = vmatprep.subr.mxu0 0.0
      %765 = vmatpush2.msra.mxu0 0.0
      %766 = vmatprep.subr.mxu0 0.0
      %767 = vmatpush2.msra.mxu0 0.0
      %768 = vmatprep.mubr.f32.mxu0 0.0
      %769 = vmatmul.mubr.f32.gmra.mxu0 %v699
      %v770 = vpop.f32.mrf.mxu0
      %v771 = vadd.f32 0.0, %v770
      %v772 = vpop.f32.mrf.mxu0
      %773 = vmatprep.mubr.f32.mxu0 0.0
      %774 = vmatmul.mubr.f32.gmra.mxu0 %v702
      %v775 = vpop.f32.mrf.mxu0
      %v776 = vadd.f32 0.0, %v775
      %v777 = vpop.f32.mrf.mxu0
      %778 = vdwg.mxu0
      %v780 = vsel %vm361, %v674, 0
      %v783 = vsel %vm361, %v679, 0
      %785 = vmatprep.subr.mxu0 0.0
      %786 = vmatpush1.msra.mxu0 0.0
      %787 = vmatprep.subr.mxu0 0.0
      %788 = vmatpush1.msra.mxu0 0.0
      %789 = vmatprep.subr.mxu0 0.0
      %790 = vmatpush1.msra.mxu0 0.0
      %791 = vmatprep.subr.mxu0 0.0
      %792 = vmatpush1.msra.mxu0 0.0
      %793 = vmatprep.subr.mxu0 0.0
      %794 = vmatpush1.msra.mxu0 0.0
      %795 = vmatprep.subr.mxu0 0.0
      %796 = vmatpush1.msra.mxu0 0.0
      %797 = vmatprep.subr.mxu0 0.0
      %798 = vmatpush1.msra.mxu0 0.0
      %799 = vmatprep.subr.mxu0 0.0
      %800 = vmatpush1.msra.mxu0 0.0
      %801 = vmatprep.subr.mxu0 0.0
      %802 = vmatpush1.msra.mxu0 %v689
      %803 = vmatprep.subr.mxu0 0.0
      %804 = vmatpush1.msra.mxu0 %v688
      %805 = vmatprep.subr.mxu0 0.0
      %806 = vmatpush1.msra.mxu0 %v687
      %807 = vmatprep.subr.mxu0 0.0
      %808 = vmatpush1.msra.mxu0 %v686
      %809 = vmatprep.subr.mxu0 0.0
      %810 = vmatpush1.msra.mxu0 %v685
      %811 = vmatprep.subr.mxu0 0.0
      %812 = vmatpush1.msra.mxu0 %v684
      %813 = vmatprep.subr.mxu0 0.0
      %814 = vmatpush1.msra.mxu0 %v683
      %815 = vmatprep.subr.mxu0 0.0
      %816 = vmatpush1.msra.mxu0 %v682
      %817 = vmatprep.subr.mxu0 0.0
      %818 = vmatpush2.msra.mxu0 0.0
      %819 = vmatprep.subr.mxu0 0.0
      %820 = vmatpush2.msra.mxu0 0.0
      %821 = vmatprep.subr.mxu0 0.0
      %822 = vmatpush2.msra.mxu0 0.0
      %823 = vmatprep.subr.mxu0 0.0
      %824 = vmatpush2.msra.mxu0 0.0
      %825 = vmatprep.subr.mxu0 0.0
      %826 = vmatpush2.msra.mxu0 0.0
      %827 = vmatprep.subr.mxu0 0.0
      %828 = vmatpush2.msra.mxu0 0.0
      %829 = vmatprep.subr.mxu0 0.0
      %830 = vmatpush2.msra.mxu0 0.0
      %831 = vmatprep.subr.mxu0 0.0
      %832 = vmatpush2.msra.mxu0 0.0
      %833 = vmatprep.subr.mxu0 0.0
      %834 = vmatpush2.msra.mxu0 0.0
      %835 = vmatprep.subr.mxu0 0.0
      %836 = vmatpush2.msra.mxu0 0.0
      %837 = vmatprep.subr.mxu0 0.0
      %838 = vmatpush2.msra.mxu0 0.0
      %839 = vmatprep.subr.mxu0 0.0
      %840 = vmatpush2.msra.mxu0 0.0
      %841 = vmatprep.subr.mxu0 0.0
      %842 = vmatpush2.msra.mxu0 0.0
      %843 = vmatprep.subr.mxu0 0.0
      %844 = vmatpush2.msra.mxu0 0.0
      %845 = vmatprep.subr.mxu0 0.0
      %846 = vmatpush2.msra.mxu0 0.0
      %847 = vmatprep.subr.mxu0 0.0
      %848 = vmatpush2.msra.mxu0 0.0
      %849 = vmatprep.mubr.f32.mxu0 0.0
      %850 = vmatmul.mubr.f32.gmra.mxu0 %v780
      %v851 = vpop.f32.mrf.mxu0
      %v852 = vadd.f32 %v771, %v851
      %v853 = vpop.f32.mrf.mxu0
      %854 = vmatprep.mubr.f32.mxu0 0.0
      %855 = vmatmul.mubr.f32.gmra.mxu0 %v783
      %v856 = vpop.f32.mrf.mxu0
      %v857 = vadd.f32 %v776, %v856
      %v858 = vpop.f32.mrf.mxu0
      %859 = vdwg.mxu0
      %s860 = scalar_lea.vmem %s4, 64
      %v861 = vld [vmem:[%s860] sm:$0xff]
      %v862 = vld [vmem:[%s860 + $0x8] sm:$0xff]
      %v863 = vld [vmem:[%s860 + $0x10] sm:$0xff]
      %v864 = vld [vmem:[%s860 + $0x18] sm:$0xff]
      %v865 = vld [vmem:[%s860 + $0x20] sm:$0xff]
      %v866 = vld [vmem:[%s860 + $0x28] sm:$0xff]
      %v867 = vld [vmem:[%s860 + $0x30] sm:$0xff]
      %v868 = vld [vmem:[%s860 + $0x38] sm:$0xff]
      %vm869 = vcmask 1046528
      %v870 = vrot.slane %v674, 1
      %v871 = vrot.slane %v679, 1
      %v872 = vsel %vm869, %v870, %v871
      %v873 = vsel %vm361, %v872, 0
      %v875 = vsel %vm361, %v871, 0
      %877 = vmatprep.subr.mxu0 0.0
      %878 = vmatpush1.msra.mxu0 0.0
      %879 = vmatprep.subr.mxu0 0.0
      %880 = vmatpush1.msra.mxu0 0.0
      %881 = vmatprep.subr.mxu0 0.0
      %882 = vmatpush1.msra.mxu0 0.0
      %883 = vmatprep.subr.mxu0 0.0
      %884 = vmatpush1.msra.mxu0 0.0
      %885 = vmatprep.subr.mxu0 0.0
      %886 = vmatpush1.msra.mxu0 0.0
      %887 = vmatprep.subr.mxu0 0.0
      %888 = vmatpush1.msra.mxu0 0.0
      %889 = vmatprep.subr.mxu0 0.0
      %890 = vmatpush1.msra.mxu0 0.0
      %891 = vmatprep.subr.mxu0 0.0
      %892 = vmatpush1.msra.mxu0 0.0
      %893 = vmatprep.subr.mxu0 0.0
      %894 = vmatpush1.msra.mxu0 %v868
      %895 = vmatprep.subr.mxu0 0.0
      %896 = vmatpush1.msra.mxu0 %v867
      %897 = vmatprep.subr.mxu0 0.0
      %898 = vmatpush1.msra.mxu0 %v866
      %899 = vmatprep.subr.mxu0 0.0
      %900 = vmatpush1.msra.mxu0 %v865
      %901 = vmatprep.subr.mxu0 0.0
      %902 = vmatpush1.msra.mxu0 %v864
      %903 = vmatprep.subr.mxu0 0.0
      %904 = vmatpush1.msra.mxu0 %v863
      %905 = vmatprep.subr.mxu0 0.0
      %906 = vmatpush1.msra.mxu0 %v862
      %907 = vmatprep.subr.mxu0 0.0
      %908 = vmatpush1.msra.mxu0 %v861
      %909 = vmatprep.subr.mxu0 0.0
      %910 = vmatpush2.msra.mxu0 0.0
      %911 = vmatprep.subr.mxu0 0.0
      %912 = vmatpush2.msra.mxu0 0.0
      %913 = vmatprep.subr.mxu0 0.0
      %914 = vmatpush2.msra.mxu0 0.0
      %915 = vmatprep.subr.mxu0 0.0
      %916 = vmatpush2.msra.mxu0 0.0
      %917 = vmatprep.subr.mxu0 0.0
      %918 = vmatpush2.msra.mxu0 0.0
      %919 = vmatprep.subr.mxu0 0.0
      %920 = vmatpush2.msra.mxu0 0.0
      %921 = vmatprep.subr.mxu0 0.0
      %922 = vmatpush2.msra.mxu0 0.0
      %923 = vmatprep.subr.mxu0 0.0
      %924 = vmatpush2.msra.mxu0 0.0
      %925 = vmatprep.subr.mxu0 0.0
      %926 = vmatpush2.msra.mxu0 0.0
      %927 = vmatprep.subr.mxu0 0.0
      %928 = vmatpush2.msra.mxu0 0.0
      %929 = vmatprep.subr.mxu0 0.0
      %930 = vmatpush2.msra.mxu0 0.0
      %931 = vmatprep.subr.mxu0 0.0
      %932 = vmatpush2.msra.mxu0 0.0
      %933 = vmatprep.subr.mxu0 0.0
      %934 = vmatpush2.msra.mxu0 0.0
      %935 = vmatprep.subr.mxu0 0.0
      %936 = vmatpush2.msra.mxu0 0.0
      %937 = vmatprep.subr.mxu0 0.0
      %938 = vmatpush2.msra.mxu0 0.0
      %939 = vmatprep.subr.mxu0 0.0
      %940 = vmatpush2.msra.mxu0 0.0
      %941 = vmatprep.mubr.f32.mxu0 0.0
      %942 = vmatmul.mubr.f32.gmra.mxu0 %v873
      %v943 = vpop.f32.mrf.mxu0
      %v944 = vadd.f32 0.0, %v943
      %v945 = vpop.f32.mrf.mxu0
      %946 = vmatprep.mubr.f32.mxu0 0.0
      %947 = vmatmul.mubr.f32.gmra.mxu0 %v875
      %v948 = vpop.f32.mrf.mxu0
      %v949 = vadd.f32 0.0, %v948
      %v950 = vpop.f32.mrf.mxu0
      %951 = vdwg.mxu0
      %v952 = vadd.f32 %v852, %v944
      %v953 = vadd.f32 %v857, %v949
      %s954 = scalar_lea.vmem %s5, 64
      %v955 = vld [vmem:[%s954] sm:$0xff]
      %v956 = vld [vmem:[%s954 + $0x8] sm:$0xff]
      %v957 = vld [vmem:[%s954 + $0x10] sm:$0xff]
      %v958 = vld [vmem:[%s954 + $0x18] sm:$0xff]
      %v959 = vld [vmem:[%s954 + $0x20] sm:$0xff]
      %v960 = vld [vmem:[%s954 + $0x28] sm:$0xff]
      %v961 = vld [vmem:[%s954 + $0x30] sm:$0xff]
      %v962 = vld [vmem:[%s954 + $0x38] sm:$0xff]
      %v963 = vrot.slane %v351, 1
      %v964 = vrot.slane %v352, 1
      %v965 = vsel %vm869, %v963, %v964
      %v966 = vsel %vm361, %v965, 0
      %v968 = vsel %vm361, %v964, 0
      %970 = vmatprep.subr.mxu0 0.0
      %971 = vmatpush1.msra.mxu0 0.0
      %972 = vmatprep.subr.mxu0 0.0
      %973 = vmatpush1.msra.mxu0 0.0
      %974 = vmatprep.subr.mxu0 0.0
      %975 = vmatpush1.msra.mxu0 0.0
      %976 = vmatprep.subr.mxu0 0.0
      %977 = vmatpush1.msra.mxu0 0.0
      %978 = vmatprep.subr.mxu0 0.0
      %979 = vmatpush1.msra.mxu0 0.0
      %980 = vmatprep.subr.mxu0 0.0
      %981 = vmatpush1.msra.mxu0 0.0
      %982 = vmatprep.subr.mxu0 0.0
      %983 = vmatpush1.msra.mxu0 0.0
      %984 = vmatprep.subr.mxu0 0.0
      %985 = vmatpush1.msra.mxu0 0.0
      %986 = vmatprep.subr.mxu0 0.0
      %987 = vmatpush1.msra.mxu0 %v962
      %988 = vmatprep.subr.mxu0 0.0
      %989 = vmatpush1.msra.mxu0 %v961
      %990 = vmatprep.subr.mxu0 0.0
      %991 = vmatpush1.msra.mxu0 %v960
      %992 = vmatprep.subr.mxu0 0.0
      %993 = vmatpush1.msra.mxu0 %v959
      %994 = vmatprep.subr.mxu0 0.0
      %995 = vmatpush1.msra.mxu0 %v958
      %996 = vmatprep.subr.mxu0 0.0
      %997 = vmatpush1.msra.mxu0 %v957
      %998 = vmatprep.subr.mxu0 0.0
      %999 = vmatpush1.msra.mxu0 %v956
      %1000 = vmatprep.subr.mxu0 0.0
      %1001 = vmatpush1.msra.mxu0 %v955
      %1002 = vmatprep.subr.mxu0 0.0
      %1003 = vmatpush2.msra.mxu0 0.0
      %1004 = vmatprep.subr.mxu0 0.0
      %1005 = vmatpush2.msra.mxu0 0.0
      %1006 = vmatprep.subr.mxu0 0.0
      %1007 = vmatpush2.msra.mxu0 0.0
      %1008 = vmatprep.subr.mxu0 0.0
      %1009 = vmatpush2.msra.mxu0 0.0
      %1010 = vmatprep.subr.mxu0 0.0
      %1011 = vmatpush2.msra.mxu0 0.0
      %1012 = vmatprep.subr.mxu0 0.0
      %1013 = vmatpush2.msra.mxu0 0.0
      %1014 = vmatprep.subr.mxu0 0.0
      %1015 = vmatpush2.msra.mxu0 0.0
      %1016 = vmatprep.subr.mxu0 0.0
      %1017 = vmatpush2.msra.mxu0 0.0
      %1018 = vmatprep.subr.mxu0 0.0
      %1019 = vmatpush2.msra.mxu0 0.0
      %1020 = vmatprep.subr.mxu0 0.0
      %1021 = vmatpush2.msra.mxu0 0.0
      %1022 = vmatprep.subr.mxu0 0.0
      %1023 = vmatpush2.msra.mxu0 0.0
      %1024 = vmatprep.subr.mxu0 0.0
      %1025 = vmatpush2.msra.mxu0 0.0
      %1026 = vmatprep.subr.mxu0 0.0
      %1027 = vmatpush2.msra.mxu0 0.0
      %1028 = vmatprep.subr.mxu0 0.0
      %1029 = vmatpush2.msra.mxu0 0.0
      %1030 = vmatprep.subr.mxu0 0.0
      %1031 = vmatpush2.msra.mxu0 0.0
      %1032 = vmatprep.subr.mxu0 0.0
      %1033 = vmatpush2.msra.mxu0 0.0
      %1034 = vmatprep.mubr.f32.mxu0 0.0
      %1035 = vmatmul.mubr.f32.gmra.mxu0 %v966
      %v1036 = vpop.f32.mrf.mxu0
      %v1037 = vadd.f32 0.0, %v1036
      %v1038 = vpop.f32.mrf.mxu0
      %1039 = vmatprep.mubr.f32.mxu0 0.0
      %1040 = vmatmul.mubr.f32.gmra.mxu0 %v968
      %v1041 = vpop.f32.mrf.mxu0
      %v1042 = vadd.f32 0.0, %v1041
      %v1043 = vpop.f32.mrf.mxu0
      %1044 = vdwg.mxu0
      %v1045 = vadd.f32 %v952, %v1037
      %v1046 = vadd.f32 %v953, %v1042
      %s1047 = scalar_lea.vmem %s4, 128
      %v1048 = vld [vmem:[%s1047] sm:$0xff]
      %v1049 = vld [vmem:[%s1047 + $0x8] sm:$0xff]
      %v1050 = vld [vmem:[%s1047 + $0x10] sm:$0xff]
      %v1051 = vld [vmem:[%s1047 + $0x18] sm:$0xff]
      %v1052 = vld [vmem:[%s1047 + $0x20] sm:$0xff]
      %v1053 = vld [vmem:[%s1047 + $0x28] sm:$0xff]
      %v1054 = vld [vmem:[%s1047 + $0x30] sm:$0xff]
      %v1055 = vld [vmem:[%s1047 + $0x38] sm:$0xff]
      %vm1056 = vcmask 1045504
      %v1057 = vrot.slane %v674, 2
      %v1058 = vrot.slane %v679, 2
      %v1059 = vsel %vm1056, %v1057, %v1058
      %v1060 = vsel %vm361, %v1059, 0
      %v1062 = vsel %vm361, %v1058, 0
      %1064 = vmatprep.subr.mxu0 0.0
      %1065 = vmatpush1.msra.mxu0 0.0
      %1066 = vmatprep.subr.mxu0 0.0
      %1067 = vmatpush1.msra.mxu0 0.0
      %1068 = vmatprep.subr.mxu0 0.0
      %1069 = vmatpush1.msra.mxu0 0.0
      %1070 = vmatprep.subr.mxu0 0.0
      %1071 = vmatpush1.msra.mxu0 0.0
      %1072 = vmatprep.subr.mxu0 0.0
      %1073 = vmatpush1.msra.mxu0 0.0
      %1074 = vmatprep.subr.mxu0 0.0
      %1075 = vmatpush1.msra.mxu0 0.0
      %1076 = vmatprep.subr.mxu0 0.0
      %1077 = vmatpush1.msra.mxu0 0.0
      %1078 = vmatprep.subr.mxu0 0.0
      %1079 = vmatpush1.msra.mxu0 0.0
      %1080 = vmatprep.subr.mxu0 0.0
      %1081 = vmatpush1.msra.mxu0 %v1055
      %1082 = vmatprep.subr.mxu0 0.0
      %1083 = vmatpush1.msra.mxu0 %v1054
      %1084 = vmatprep.subr.mxu0 0.0
      %1085 = vmatpush1.msra.mxu0 %v1053
      %1086 = vmatprep.subr.mxu0 0.0
      %1087 = vmatpush1.msra.mxu0 %v1052
      %1088 = vmatprep.subr.mxu0 0.0
      %1089 = vmatpush1.msra.mxu0 %v1051
      %1090 = vmatprep.subr.mxu0 0.0
      %1091 = vmatpush1.msra.mxu0 %v1050
      %1092 = vmatprep.subr.mxu0 0.0
      %1093 = vmatpush1.msra.mxu0 %v1049
      %1094 = vmatprep.subr.mxu0 0.0
      %1095 = vmatpush1.msra.mxu0 %v1048
      %1096 = vmatprep.subr.mxu0 0.0
      %1097 = vmatpush2.msra.mxu0 0.0
      %1098 = vmatprep.subr.mxu0 0.0
      %1099 = vmatpush2.msra.mxu0 0.0
      %1100 = vmatprep.subr.mxu0 0.0
      %1101 = vmatpush2.msra.mxu0 0.0
      %1102 = vmatprep.subr.mxu0 0.0
      %1103 = vmatpush2.msra.mxu0 0.0
      %1104 = vmatprep.subr.mxu0 0.0
      %1105 = vmatpush2.msra.mxu0 0.0
      %1106 = vmatprep.subr.mxu0 0.0
      %1107 = vmatpush2.msra.mxu0 0.0
      %1108 = vmatprep.subr.mxu0 0.0
      %1109 = vmatpush2.msra.mxu0 0.0
      %1110 = vmatprep.subr.mxu0 0.0
      %1111 = vmatpush2.msra.mxu0 0.0
      %1112 = vmatprep.subr.mxu0 0.0
      %1113 = vmatpush2.msra.mxu0 0.0
      %1114 = vmatprep.subr.mxu0 0.0
      %1115 = vmatpush2.msra.mxu0 0.0
      %1116 = vmatprep.subr.mxu0 0.0
      %1117 = vmatpush2.msra.mxu0 0.0
      %1118 = vmatprep.subr.mxu0 0.0
      %1119 = vmatpush2.msra.mxu0 0.0
      %1120 = vmatprep.subr.mxu0 0.0
      %1121 = vmatpush2.msra.mxu0 0.0
      %1122 = vmatprep.subr.mxu0 0.0
      %1123 = vmatpush2.msra.mxu0 0.0
      %1124 = vmatprep.subr.mxu0 0.0
      %1125 = vmatpush2.msra.mxu0 0.0
      %1126 = vmatprep.subr.mxu0 0.0
      %1127 = vmatpush2.msra.mxu0 0.0
      %1128 = vmatprep.mubr.f32.mxu0 0.0
      %1129 = vmatmul.mubr.f32.gmra.mxu0 %v1060
      %v1130 = vpop.f32.mrf.mxu0
      %v1131 = vadd.f32 0.0, %v1130
      %v1132 = vpop.f32.mrf.mxu0
      %1133 = vmatprep.mubr.f32.mxu0 0.0
      %1134 = vmatmul.mubr.f32.gmra.mxu0 %v1062
      %v1135 = vpop.f32.mrf.mxu0
      %v1136 = vadd.f32 0.0, %v1135
      %v1137 = vpop.f32.mrf.mxu0
      %1138 = vdwg.mxu0
      %v1139 = vadd.f32 %v1045, %v1131
      %v1140 = vadd.f32 %v1046, %v1136
      %s1141 = scalar_lea.vmem %s5, 128
      %v1142 = vld [vmem:[%s1141] sm:$0xff]
      %v1143 = vld [vmem:[%s1141 + $0x8] sm:$0xff]
      %v1144 = vld [vmem:[%s1141 + $0x10] sm:$0xff]
      %v1145 = vld [vmem:[%s1141 + $0x18] sm:$0xff]
      %v1146 = vld [vmem:[%s1141 + $0x20] sm:$0xff]
      %v1147 = vld [vmem:[%s1141 + $0x28] sm:$0xff]
      %v1148 = vld [vmem:[%s1141 + $0x30] sm:$0xff]
      %v1149 = vld [vmem:[%s1141 + $0x38] sm:$0xff]
      %v1150 = vrot.slane %v351, 2
      %v1151 = vrot.slane %v352, 2
      %v1152 = vsel %vm1056, %v1150, %v1151
      %v1153 = vsel %vm361, %v1152, 0
      %v1155 = vsel %vm361, %v1151, 0
      %1157 = vmatprep.subr.mxu0 0.0
      %1158 = vmatpush1.msra.mxu0 0.0
      %1159 = vmatprep.subr.mxu0 0.0
      %1160 = vmatpush1.msra.mxu0 0.0
      %1161 = vmatprep.subr.mxu0 0.0
      %1162 = vmatpush1.msra.mxu0 0.0
      %1163 = vmatprep.subr.mxu0 0.0
      %1164 = vmatpush1.msra.mxu0 0.0
      %1165 = vmatprep.subr.mxu0 0.0
      %1166 = vmatpush1.msra.mxu0 0.0
      %1167 = vmatprep.subr.mxu0 0.0
      %1168 = vmatpush1.msra.mxu0 0.0
      %1169 = vmatprep.subr.mxu0 0.0
      %1170 = vmatpush1.msra.mxu0 0.0
      %1171 = vmatprep.subr.mxu0 0.0
      %1172 = vmatpush1.msra.mxu0 0.0
      %1173 = vmatprep.subr.mxu0 0.0
      %1174 = vmatpush1.msra.mxu0 %v1149
      %1175 = vmatprep.subr.mxu0 0.0
      %1176 = vmatpush1.msra.mxu0 %v1148
      %1177 = vmatprep.subr.mxu0 0.0
      %1178 = vmatpush1.msra.mxu0 %v1147
      %1179 = vmatprep.subr.mxu0 0.0
      %1180 = vmatpush1.msra.mxu0 %v1146
      %1181 = vmatprep.subr.mxu0 0.0
      %1182 = vmatpush1.msra.mxu0 %v1145
      %1183 = vmatprep.subr.mxu0 0.0
      %1184 = vmatpush1.msra.mxu0 %v1144
      %1185 = vmatprep.subr.mxu0 0.0
      %1186 = vmatpush1.msra.mxu0 %v1143
      %1187 = vmatprep.subr.mxu0 0.0
      %1188 = vmatpush1.msra.mxu0 %v1142
      %1189 = vmatprep.subr.mxu0 0.0
      %1190 = vmatpush2.msra.mxu0 0.0
      %1191 = vmatprep.subr.mxu0 0.0
      %1192 = vmatpush2.msra.mxu0 0.0
      %1193 = vmatprep.subr.mxu0 0.0
      %1194 = vmatpush2.msra.mxu0 0.0
      %1195 = vmatprep.subr.mxu0 0.0
      %1196 = vmatpush2.msra.mxu0 0.0
      %1197 = vmatprep.subr.mxu0 0.0
      %1198 = vmatpush2.msra.mxu0 0.0
      %1199 = vmatprep.subr.mxu0 0.0
      %1200 = vmatpush2.msra.mxu0 0.0
      %1201 = vmatprep.subr.mxu0 0.0
      %1202 = vmatpush2.msra.mxu0 0.0
      %1203 = vmatprep.subr.mxu0 0.0
      %1204 = vmatpush2.msra.mxu0 0.0
      %1205 = vmatprep.subr.mxu0 0.0
      %1206 = vmatpush2.msra.mxu0 0.0
      %1207 = vmatprep.subr.mxu0 0.0
      %1208 = vmatpush2.msra.mxu0 0.0
      %1209 = vmatprep.subr.mxu0 0.0
      %1210 = vmatpush2.msra.mxu0 0.0
      %1211 = vmatprep.subr.mxu0 0.0
      %1212 = vmatpush2.msra.mxu0 0.0
      %1213 = vmatprep.subr.mxu0 0.0
      %1214 = vmatpush2.msra.mxu0 0.0
      %1215 = vmatprep.subr.mxu0 0.0
      %1216 = vmatpush2.msra.mxu0 0.0
      %1217 = vmatprep.subr.mxu0 0.0
      %1218 = vmatpush2.msra.mxu0 0.0
      %1219 = vmatprep.subr.mxu0 0.0
      %1220 = vmatpush2.msra.mxu0 0.0
      %1221 = vmatprep.mubr.f32.mxu0 0.0
      %1222 = vmatmul.mubr.f32.gmra.mxu0 %v1153
      %v1223 = vpop.f32.mrf.mxu0
      %v1224 = vadd.f32 0.0, %v1223
      %v1225 = vpop.f32.mrf.mxu0
      %1226 = vmatprep.mubr.f32.mxu0 0.0
      %1227 = vmatmul.mubr.f32.gmra.mxu0 %v1155
      %v1228 = vpop.f32.mrf.mxu0
      %v1229 = vadd.f32 0.0, %v1228
      %v1230 = vpop.f32.mrf.mxu0
      %1231 = vdwg.mxu0
      %v1232 = vadd.f32 %v1139, %v1224
      %v1233 = vadd.f32 %v1140, %v1229
      %v1234 = vld [vmem:[%s6] sm:$0x1]
      %v1236 = vlaneseq
      %v1237 = vshrl.u32 %v1236, 7
      %v1238 = vsub.s32 0, %v1237
      %v1239 = vrot.slane %v1234, %v1238
      %v1241 = vadd.f32 %v1232, %v1239
      %v1242 = vadd.f32 %v1233, %v1239
      %v1243 = vmax.f32 %v1241, 0.0
      %v1244 = vmax.f32 %v1242, 0.0
      %v1245 = vld [vmem:[%s7] sm:$0xff]
      %v1246 = vld [vmem:[%s7 + $0x8] sm:$0xff]
      %v1247 = vld [vmem:[%s7 + $0x10] sm:$0xff]
      %v1248 = vld [vmem:[%s7 + $0x18] sm:$0xff]
      %v1249 = vld [vmem:[%s7 + $0x20] sm:$0xff]
      %v1250 = vld [vmem:[%s7 + $0x28] sm:$0xff]
      %v1251 = vld [vmem:[%s7 + $0x30] sm:$0xff]
      %s1252 = scalar_lea.vmem %s7, 56
      %v1253 = vld [vmem:[%s1252] sm:$0xff]
      %v1254 = vld [vmem:[%s1252 + $0x8] sm:$0xff]
      %v1255 = vld [vmem:[%s1252 + $0x10] sm:$0xff]
      %v1256 = vld [vmem:[%s1252 + $0x18] sm:$0xff]
      %v1257 = vld [vmem:[%s1252 + $0x20] sm:$0xff]
      %v1258 = vld [vmem:[%s1252 + $0x28] sm:$0xff]
      %v1259 = vld [vmem:[%s1252 + $0x30] sm:$0xff]
      %v1262 = vrot.slane %v1243, 1
      %v1263 = vrot.slane %v1244, 1
      %v1264 = vsel %vm869, %v1262, %v1263
      %vm1265 = vcmask 457728
      %v1266 = vsel %vm1265, %v1264, 0
      %v1268 = vsel %vm1265, %v1263, 0
      %1270 = vmatprep.subr.mxu0 0.0
      %1271 = vmatpush1.msra.mxu0 0.0
      %1272 = vmatprep.subr.mxu0 0.0
      %1273 = vmatpush1.msra.mxu0 0.0
      %1274 = vmatprep.subr.mxu0 0.0
      %1275 = vmatpush1.msra.mxu0 0.0
      %1276 = vmatprep.subr.mxu0 0.0
      %1277 = vmatpush1.msra.mxu0 0.0
      %1278 = vmatprep.subr.mxu0 0.0
      %1279 = vmatpush1.msra.mxu0 0.0
      %1280 = vmatprep.subr.mxu0 0.0
      %1281 = vmatpush1.msra.mxu0 0.0
      %1282 = vmatprep.subr.mxu0 0.0
      %1283 = vmatpush1.msra.mxu0 0.0
      %1284 = vmatprep.subr.mxu0 0.0
      %1285 = vmatpush1.msra.mxu0 0.0
      %1286 = vmatprep.subr.mxu0 0.0
      %1287 = vmatpush1.msra.mxu0 0.0
      %1288 = vmatprep.subr.mxu0 0.0
      %1289 = vmatpush1.msra.mxu0 %v1259
      %1290 = vmatprep.subr.mxu0 0.0
      %1291 = vmatpush1.msra.mxu0 %v1258
      %1292 = vmatprep.subr.mxu0 0.0
      %1293 = vmatpush1.msra.mxu0 %v1257
      %1294 = vmatprep.subr.mxu0 0.0
      %1295 = vmatpush1.msra.mxu0 %v1256
      %1296 = vmatprep.subr.mxu0 0.0
      %1297 = vmatpush1.msra.mxu0 %v1255
      %1298 = vmatprep.subr.mxu0 0.0
      %1299 = vmatpush1.msra.mxu0 %v1254
      %1300 = vmatprep.subr.mxu0 0.0
      %1301 = vmatpush1.msra.mxu0 %v1253
      %1302 = vmatprep.subr.mxu0 0.0
      %1303 = vmatpush2.msra.mxu0 0.0
      %1304 = vmatprep.subr.mxu0 0.0
      %1305 = vmatpush2.msra.mxu0 0.0
      %1306 = vmatprep.subr.mxu0 0.0
      %1307 = vmatpush2.msra.mxu0 0.0
      %1308 = vmatprep.subr.mxu0 0.0
      %1309 = vmatpush2.msra.mxu0 0.0
      %1310 = vmatprep.subr.mxu0 0.0
      %1311 = vmatpush2.msra.mxu0 0.0
      %1312 = vmatprep.subr.mxu0 0.0
      %1313 = vmatpush2.msra.mxu0 0.0
      %1314 = vmatprep.subr.mxu0 0.0
      %1315 = vmatpush2.msra.mxu0 0.0
      %1316 = vmatprep.subr.mxu0 0.0
      %1317 = vmatpush2.msra.mxu0 0.0
      %1318 = vmatprep.subr.mxu0 0.0
      %1319 = vmatpush2.msra.mxu0 0.0
      %1320 = vmatprep.subr.mxu0 0.0
      %1321 = vmatpush2.msra.mxu0 0.0
      %1322 = vmatprep.subr.mxu0 0.0
      %1323 = vmatpush2.msra.mxu0 0.0
      %1324 = vmatprep.subr.mxu0 0.0
      %1325 = vmatpush2.msra.mxu0 0.0
      %1326 = vmatprep.subr.mxu0 0.0
      %1327 = vmatpush2.msra.mxu0 0.0
      %1328 = vmatprep.subr.mxu0 0.0
      %1329 = vmatpush2.msra.mxu0 0.0
      %1330 = vmatprep.subr.mxu0 0.0
      %1331 = vmatpush2.msra.mxu0 0.0
      %1332 = vmatprep.subr.mxu0 0.0
      %1333 = vmatpush2.msra.mxu0 0.0
      %1334 = vmatprep.mubr.f32.mxu0 0.0
      %1335 = vmatmul.mubr.f32.gmra.mxu0 %v1266
      %v1336 = vpop.f32.mrf.mxu0
      %v1337 = vadd.f32 0.0, %v1336
      %v1338 = vpop.f32.mrf.mxu0
      %1339 = vmatprep.mubr.f32.mxu0 0.0
      %1340 = vmatmul.mubr.f32.gmra.mxu0 %v1268
      %v1341 = vpop.f32.mrf.mxu0
      %v1342 = vadd.f32 0.0, %v1341
      %v1343 = vpop.f32.mrf.mxu0
      %1344 = vdwg.mxu0
      %v1345 = vsel %vm1265, %v1243, 0
      %v1347 = vsel %vm1265, %v1244, 0
      %1349 = vmatprep.subr.mxu0 0.0
      %1350 = vmatpush1.msra.mxu0 0.0
      %1351 = vmatprep.subr.mxu0 0.0
      %1352 = vmatpush1.msra.mxu0 0.0
      %1353 = vmatprep.subr.mxu0 0.0
      %1354 = vmatpush1.msra.mxu0 0.0
      %1355 = vmatprep.subr.mxu0 0.0
      %1356 = vmatpush1.msra.mxu0 0.0
      %1357 = vmatprep.subr.mxu0 0.0
      %1358 = vmatpush1.msra.mxu0 0.0
      %1359 = vmatprep.subr.mxu0 0.0
      %1360 = vmatpush1.msra.mxu0 0.0
      %1361 = vmatprep.subr.mxu0 0.0
      %1362 = vmatpush1.msra.mxu0 0.0
      %1363 = vmatprep.subr.mxu0 0.0
      %1364 = vmatpush1.msra.mxu0 0.0
      %1365 = vmatprep.subr.mxu0 0.0
      %1366 = vmatpush1.msra.mxu0 0.0
      %1367 = vmatprep.subr.mxu0 0.0
      %1368 = vmatpush1.msra.mxu0 %v1251
      %1369 = vmatprep.subr.mxu0 0.0
      %1370 = vmatpush1.msra.mxu0 %v1250
      %1371 = vmatprep.subr.mxu0 0.0
      %1372 = vmatpush1.msra.mxu0 %v1249
      %1373 = vmatprep.subr.mxu0 0.0
      %1374 = vmatpush1.msra.mxu0 %v1248
      %1375 = vmatprep.subr.mxu0 0.0
      %1376 = vmatpush1.msra.mxu0 %v1247
      %1377 = vmatprep.subr.mxu0 0.0
      %1378 = vmatpush1.msra.mxu0 %v1246
      %1379 = vmatprep.subr.mxu0 0.0
      %1380 = vmatpush1.msra.mxu0 %v1245
      %1381 = vmatprep.subr.mxu0 0.0
      %1382 = vmatpush2.msra.mxu0 0.0
      %1383 = vmatprep.subr.mxu0 0.0
      %1384 = vmatpush2.msra.mxu0 0.0
      %1385 = vmatprep.subr.mxu0 0.0
      %1386 = vmatpush2.msra.mxu0 0.0
      %1387 = vmatprep.subr.mxu0 0.0
      %1388 = vmatpush2.msra.mxu0 0.0
      %1389 = vmatprep.subr.mxu0 0.0
      %1390 = vmatpush2.msra.mxu0 0.0
      %1391 = vmatprep.subr.mxu0 0.0
      %1392 = vmatpush2.msra.mxu0 0.0
      %1393 = vmatprep.subr.mxu0 0.0
      %1394 = vmatpush2.msra.mxu0 0.0
      %1395 = vmatprep.subr.mxu0 0.0
      %1396 = vmatpush2.msra.mxu0 0.0
      %1397 = vmatprep.subr.mxu0 0.0
      %1398 = vmatpush2.msra.mxu0 0.0
      %1399 = vmatprep.subr.mxu0 0.0
      %1400 = vmatpush2.msra.mxu0 0.0
      %1401 = vmatprep.subr.mxu0 0.0
      %1402 = vmatpush2.msra.mxu0 0.0
      %1403 = vmatprep.subr.mxu0 0.0
      %1404 = vmatpush2.msra.mxu0 0.0
      %1405 = vmatprep.subr.mxu0 0.0
      %1406 = vmatpush2.msra.mxu0 0.0
      %1407 = vmatprep.subr.mxu0 0.0
      %1408 = vmatpush2.msra.mxu0 0.0
      %1409 = vmatprep.subr.mxu0 0.0
      %1410 = vmatpush2.msra.mxu0 0.0
      %1411 = vmatprep.subr.mxu0 0.0
      %1412 = vmatpush2.msra.mxu0 0.0
      %1413 = vmatprep.mubr.f32.mxu0 0.0
      %1414 = vmatmul.mubr.f32.gmra.mxu0 %v1345
      %v1415 = vpop.f32.mrf.mxu0
      %v1416 = vadd.f32 %v1337, %v1415
      %v1417 = vpop.f32.mrf.mxu0
      %1418 = vmatprep.mubr.f32.mxu0 0.0
      %1419 = vmatmul.mubr.f32.gmra.mxu0 %v1347
      %v1420 = vpop.f32.mrf.mxu0
      %v1421 = vadd.f32 %v1342, %v1420
      %v1422 = vpop.f32.mrf.mxu0
      %1423 = vdwg.mxu0
      %s1424 = scalar_lea.vmem %s7, 112
      %v1425 = vld [vmem:[%s1424] sm:$0xff]
      %v1426 = vld [vmem:[%s1424 + $0x8] sm:$0xff]
      %v1427 = vld [vmem:[%s1424 + $0x10] sm:$0xff]
      %v1428 = vld [vmem:[%s1424 + $0x18] sm:$0xff]
      %v1429 = vld [vmem:[%s1424 + $0x20] sm:$0xff]
      %v1430 = vld [vmem:[%s1424 + $0x28] sm:$0xff]
      %v1431 = vld [vmem:[%s1424 + $0x30] sm:$0xff]
      %v1432 = vrot.slane %v1243, 2
      %v1433 = vrot.slane %v1244, 2
      %v1434 = vsel %vm1056, %v1432, %v1433
      %v1435 = vsel %vm1265, %v1434, 0
      %v1437 = vsel %vm1265, %v1433, 0
      %1439 = vmatprep.subr.mxu0 0.0
      %1440 = vmatpush1.msra.mxu0 0.0
      %1441 = vmatprep.subr.mxu0 0.0
      %1442 = vmatpush1.msra.mxu0 0.0
      %1443 = vmatprep.subr.mxu0 0.0
      %1444 = vmatpush1.msra.mxu0 0.0
      %1445 = vmatprep.subr.mxu0 0.0
      %1446 = vmatpush1.msra.mxu0 0.0
      %1447 = vmatprep.subr.mxu0 0.0
      %1448 = vmatpush1.msra.mxu0 0.0
      %1449 = vmatprep.subr.mxu0 0.0
      %1450 = vmatpush1.msra.mxu0 0.0
      %1451 = vmatprep.subr.mxu0 0.0
      %1452 = vmatpush1.msra.mxu0 0.0
      %1453 = vmatprep.subr.mxu0 0.0
      %1454 = vmatpush1.msra.mxu0 0.0
      %1455 = vmatprep.subr.mxu0 0.0
      %1456 = vmatpush1.msra.mxu0 0.0
      %1457 = vmatprep.subr.mxu0 0.0
      %1458 = vmatpush1.msra.mxu0 %v1431
      %1459 = vmatprep.subr.mxu0 0.0
      %1460 = vmatpush1.msra.mxu0 %v1430
      %1461 = vmatprep.subr.mxu0 0.0
      %1462 = vmatpush1.msra.mxu0 %v1429
      %1463 = vmatprep.subr.mxu0 0.0
      %1464 = vmatpush1.msra.mxu0 %v1428
      %1465 = vmatprep.subr.mxu0 0.0
      %1466 = vmatpush1.msra.mxu0 %v1427
      %1467 = vmatprep.subr.mxu0 0.0
      %1468 = vmatpush1.msra.mxu0 %v1426
      %1469 = vmatprep.subr.mxu0 0.0
      %1470 = vmatpush1.msra.mxu0 %v1425
      %1471 = vmatprep.subr.mxu0 0.0
      %1472 = vmatpush2.msra.mxu0 0.0
      %1473 = vmatprep.subr.mxu0 0.0
      %1474 = vmatpush2.msra.mxu0 0.0
      %1475 = vmatprep.subr.mxu0 0.0
      %1476 = vmatpush2.msra.mxu0 0.0
      %1477 = vmatprep.subr.mxu0 0.0
      %1478 = vmatpush2.msra.mxu0 0.0
      %1479 = vmatprep.subr.mxu0 0.0
      %1480 = vmatpush2.msra.mxu0 0.0
      %1481 = vmatprep.subr.mxu0 0.0
      %1482 = vmatpush2.msra.mxu0 0.0
      %1483 = vmatprep.subr.mxu0 0.0
      %1484 = vmatpush2.msra.mxu0 0.0
      %1485 = vmatprep.subr.mxu0 0.0
      %1486 = vmatpush2.msra.mxu0 0.0
      %1487 = vmatprep.subr.mxu0 0.0
      %1488 = vmatpush2.msra.mxu0 0.0
      %1489 = vmatprep.subr.mxu0 0.0
      %1490 = vmatpush2.msra.mxu0 0.0
      %1491 = vmatprep.subr.mxu0 0.0
      %1492 = vmatpush2.msra.mxu0 0.0
      %1493 = vmatprep.subr.mxu0 0.0
      %1494 = vmatpush2.msra.mxu0 0.0
      %1495 = vmatprep.subr.mxu0 0.0
      %1496 = vmatpush2.msra.mxu0 0.0
      %1497 = vmatprep.subr.mxu0 0.0
      %1498 = vmatpush2.msra.mxu0 0.0
      %1499 = vmatprep.subr.mxu0 0.0
      %1500 = vmatpush2.msra.mxu0 0.0
      %1501 = vmatprep.subr.mxu0 0.0
      %1502 = vmatpush2.msra.mxu0 0.0
      %1503 = vmatprep.mubr.f32.mxu0 0.0
      %1504 = vmatmul.mubr.f32.gmra.mxu0 %v1435
      %v1505 = vpop.f32.mrf.mxu0
      %v1506 = vadd.f32 0.0, %v1505
      %v1507 = vpop.f32.mrf.mxu0
      %1508 = vmatprep.mubr.f32.mxu0 0.0
      %1509 = vmatmul.mubr.f32.gmra.mxu0 %v1437
      %v1510 = vpop.f32.mrf.mxu0
      %v1511 = vadd.f32 0.0, %v1510
      %v1512 = vpop.f32.mrf.mxu0
      %1513 = vdwg.mxu0
      %v1514 = vadd.f32 %v1416, %v1506
      %v1515 = vadd.f32 %v1421, %v1511
      %v1516 = vld [vmem:[%s8] sm:$0x1]
      %v1518 = vlaneseq
      %v1519 = vshrl.u32 %v1518, 7
      %v1520 = vsub.s32 0, %v1519
      %v1521 = vrot.slane %v1516, %v1520
      %v1523 = vadd.f32 %v1514, %v1521
      %v1524 = vadd.f32 %v1515, %v1521
      %v1525 = vmax.f32 %v1523, 0.0
      %v1526 = vmax.f32 %v1524, 0.0
      %1527 = vst [vmem:[%s349] sm:$0xff] %v1525
      %1528 = vst [vmem:[%s349 + $0x8] sm:$0xf] %v1526
      %p1529 = scmp.lt.s32.totalorder %s20, 1
      %s1530 = scalar_select %p1529, %s20, 1
      %s1531 = smul.addr %s1530, 2
      %s1532 = smul.addr %s1531, 8
      %s1533 = scalar_lea.vmem %s9, %s1532
      // Predicated region
      $region57: #{unet_upsampling_concat_block.1} parent=55 // pred_check
        %p1534 = pneg %p237
      $region58: #{unet_upsampling_concat_block.1} parent=55 // pred_check_branch
        %1536 = sbr.rel (%p1534) target = $region60
      $region59: #{unet_upsampling_concat_block.1} parent=55 // pred_region
        _
      $region60: #{unet_upsampling_concat_block.1} parent=55 // pred_fallthru
        _
    $region56: #{unet_upsampling_concat_block.1} parent=5 // pred_fallthru
      _
    %p1537 = scmp.le.s32.totalorder 2, %s15
    // Predicated region
    $region61: #{unet_upsampling_concat_block.1} parent=5 // pred_check
      %p1538 = pneg %p1537
    $region62: #{unet_upsampling_concat_block.1} parent=5 // pred_check_branch
      %1540 = sbr.rel (%p1538) target = $region64
    $region63: #{unet_upsampling_concat_block.1} parent=5 // pred_region
      %s1541 = ssub.s32 %s15, 2
      // Predicated region
      $region65: #{unet_upsampling_concat_block.1} parent=63 // pred_check
        %p1542 = pneg %p243
      $region66: #{unet_upsampling_concat_block.1} parent=63 // pred_check_branch
        %1544 = sbr.rel (%p1542) target = $region68
      $region67: #{unet_upsampling_concat_block.1} parent=63 // pred_region
        %p1545 = scmp.lt.s32.totalorder %s21, 1
        %s1546 = scalar_select %p1545, %s21, 1
        %s1547 = smul.addr %s1546, 2
        %s1548 = smul.addr %s1547, 8
        %s1549 = scalar_lea.vmem %s9, %s1548
      $region68: #{unet_upsampling_concat_block.1} parent=63 // pred_fallthru
        _
    $region64: #{unet_upsampling_concat_block.1} parent=5 // pred_fallthru
      _
  $region6: #{unet_upsampling_concat_block.1} parent=0 // loop_footer
    %s19 = sadd.s32 1, %s15
  $region7: #{unet_upsampling_concat_block.1} parent=0 // loop_footer_branch
    %14 = sbr.rel target = $region3
  $region8: #{unet_upsampling_concat_block.1} parent=0 // loop_exit
    _

</llo_original>
